<compile_context>
chip_gen: v7x
topology: tpu7x:2x2x1
jax: 0.10.0
libtpu: 0.0.40
codegen_flags: <defaults>
</compile_context>

<pallas_src>
import jax
import jax.numpy as jnp
import numpy as np
from jax import lax
from jax.experimental import pallas as pl
from jax.experimental.pallas import tpu as pltpu

BN_EPS = 1e-5
TM_MAX = 1024    # M-tile cap; bf16 A keeps the footprint well under 48 MiB


def _round_up(x, m):
    return (x + m - 1) // m * m


def _choose_tm(m):
    """M tile: multiple of 8, capped at TM_MAX, and >= 2 grid steps when possible
    (v7x has 2 TensorCores sharded over the 'parallel' M axis)."""
    tm = _round_up(m, 8)
    if m > 8:
        tm = min(tm, _round_up((m + 1) // 2, 8))
    return min(TM_MAX, tm)


# -------- Pallas fused kernel: matmul + BN(scale, bias) + (residual) + (ReLU) ------

def _make_kernel(has_residual, apply_relu):
    def kernel(a_ref, w_ref, s_ref, b_ref, *rest):
        if has_residual:
            r_ref, o_ref = rest
        else:
            (o_ref,) = rest
        acc = jnp.dot(a_ref[...], w_ref[...], preferred_element_type=jnp.float32)
        out = acc * s_ref[...] + b_ref[...]           # BN applied in f32 epilogue
        if has_residual:
            out = out + r_ref[...].astype(jnp.float32)
        if apply_relu:
            out = jnp.maximum(out, 0.0)
        o_ref[...] = out.astype(o_ref.dtype)
    return kernel


def fused_matmul_bn(a, w, scale, bias, residual=None, relu=True,
                    out_dtype=jnp.bfloat16):
    """a: (M, K) bf16 patches; w: (K, N) bf16; scale/bias: (1, N) f32;
    residual: (M, N) bf16/f32 or None.  Returns (M, N) out_dtype."""
    M, K = a.shape
    N = w.shape[1]
    TM = _choose_tm(M)
    grid = (pl.cdiv(M, TM),)

    args = [a, w, scale, bias]
    in_specs = [
        pl.BlockSpec((TM, K), lambda i: (i, 0)),
        pl.BlockSpec((K, N), lambda i: (0, 0)),
        pl.BlockSpec((1, N), lambda i: (0, 0)),
        pl.BlockSpec((1, N), lambda i: (0, 0)),
    ]
    if residual is not None:
        args.append(residual)
        in_specs.append(pl.BlockSpec((TM, N), lambda i: (i, 0)))

    return pl.pallas_call(
        _make_kernel(residual is not None, relu),
        out_shape=jax.ShapeDtypeStruct((M, N), out_dtype),
        grid=grid,
        in_specs=in_specs,
        out_specs=pl.BlockSpec((TM, N), lambda i: (i, 0)),
        compiler_params=pltpu.CompilerParams(
            dimension_semantics=("parallel",),
            vmem_limit_bytes=48 * 1024 * 1024,
        ),
    )(*args)


# ----------------------- one-time parameter preparation --------------------------

# output parity phase -> ((kernel tap index a, input offset), ...)
_PHASE_TAPS = {0: ((1, 0),), 1: ((0, 0), (2, 1))}


def _bn_scale_bias(bn):
    gamma, beta, mean, var = bn
    scale = gamma / jnp.sqrt(var + BN_EPS)
    return scale, beta - mean * scale


def _prep_conv(w, bn):
    """Conv3d weight (Cout, Cin, 3, 3, 3) -> (27*Cin, Cout) bf16 tap-major."""
    Cout, Cin = w.shape[0], w.shape[1]
    wk = w.transpose(2, 3, 4, 1, 0).reshape(27 * Cin, Cout).astype(jnp.bfloat16)
    scale, bias = _bn_scale_bias(bn)
    return {'w': wk,
            'scale': scale.reshape(1, Cout).astype(jnp.float32),
            'bias': bias.reshape(1, Cout).astype(jnp.float32)}


def _prep_deconv(w_t, bn):
    """ConvTranspose3d weight (Cin, Cout, 3, 3, 3) -> phase-fused (8*Cin, 8*Cout)
    bf16: columns are the 8 output parity phases, rows the 2x2x2 input offsets;
    unused (offset, phase) pairs are zero."""
    Cin, Cout = w_t.shape[0], w_t.shape[1]
    # equivalent direct-conv weight: w_eq[o, i, a, b, c] = w_t[i, o, 2-a, 2-b, 2-c]
    w_eq = jnp.flip(w_t, axis=(2, 3, 4)).transpose(1, 0, 2, 3, 4)
    wbig = jnp.zeros((2, 2, 2, Cin, 2, 2, 2, Cout), jnp.float32)
    for pd in (0, 1):
        for ph in (0, 1):
            for pw in (0, 1):
                for ad, od in _PHASE_TAPS[pd]:
                    for ah, oh in _PHASE_TAPS[ph]:
                        for aw, ow in _PHASE_TAPS[pw]:
                            wbig = wbig.at[od, oh, ow, :, pd, ph, pw, :].set(
                                w_eq[:, :, ad, ah, aw].T)
    scale, bias = _bn_scale_bias(bn)
    return {'w': wbig.reshape(8 * Cin, 8 * Cout).astype(jnp.bfloat16),
            'scale': jnp.tile(scale, 8).reshape(1, 8 * Cout).astype(jnp.float32),
            'bias': jnp.tile(bias, 8).reshape(1, 8 * Cout).astype(jnp.float32)}


def prepare_params(p):
    return {'l1': _prep_conv(p['w1'], p['bn1']),
            'l2': _prep_conv(p['w2'], p['bn2']),
            'l3': _prep_conv(p['w3'], p['bn3']),
            'l4': _prep_conv(p['w4'], p['bn4']),
            'l5': _prep_deconv(p['w5'], p['bn5']),
            'l6': _prep_deconv(p['w6'], p['bn6'])}


# --------------------------------- glue (JAX) ------------------------------------

def convbn_3d_cl(xcl, layer, stride, relu, residual_cl=None, out_dtype=jnp.bfloat16):
    """Conv3d(k=3, pad=1, bias=False)+BN3d(eval) [+residual] [+ReLU], channels-last."""
    B, D, H, W, Cin = xcl.shape
    N = layer['w'].shape[1]
    Do = (D + 2 - 3) // stride + 1
    Ho = (H + 2 - 3) // stride + 1
    Wo = (W + 2 - 3) // stride + 1

    xb = xcl.astype(jnp.bfloat16)
    xp = jnp.pad(xb, ((0, 0), (1, 1), (1, 1), (1, 1), (0, 0)))
    patches = [
        xp[:,
           kd:kd + stride * (Do - 1) + 1:stride,
           kh:kh + stride * (Ho - 1) + 1:stride,
           kw:kw + stride * (Wo - 1) + 1:stride, :]
        for kd in range(3) for kh in range(3) for kw in range(3)]
    a = jnp.stack(patches, axis=4).reshape(B * Do * Ho * Wo, 27 * Cin)

    res = (residual_cl.reshape(B * Do * Ho * Wo, N)
           if residual_cl is not None else None)
    out = fused_matmul_bn(a, layer['w'], layer['scale'], layer['bias'],
                          res, relu, out_dtype)
    return out.reshape(B, Do, Ho, Wo, N)


def deconvbn_3d_cl(xcl, layer, relu, residual_cl=None, out_dtype=jnp.bfloat16):
    """ConvTranspose3d(k=3,s=2,p=1,op=1,bias=False)+BN3d(eval) [+res] [+ReLU],
    channels-last, all 8 parity phases fused into one pallas_call."""
    B, D, H, W, Cin = xcl.shape
    Cout = layer['w'].shape[1] // 8
    M = B * D * H * W

    xb = xcl.astype(jnp.bfloat16)
    xp = jnp.pad(xb, ((0, 0), (0, 1), (0, 1), (0, 1), (0, 0)))   # hi-pad by 1
    patches = [xp[:, od:od + D, oh:oh + H, ow:ow + W, :]
               for od in (0, 1) for oh in (0, 1) for ow in (0, 1)]
    a = jnp.stack(patches, axis=4).reshape(M, 8 * Cin)           # K = 8*Cin

    res = None
    if residual_cl is not None:
        # single interleave gather: (B,2D,2H,2W,C) -> (M, 8*Cout), phase-major cols
        res = (residual_cl.reshape(B, D, 2, H, 2, W, 2, Cout)
               .transpose(0, 1, 3, 5, 2, 4, 6, 7)
               .reshape(M, 8 * Cout))

    o = fused_matmul_bn(a, layer['w'], layer['scale'], layer['bias'],
                        res, relu, out_dtype)                    # (M, 8*Cout)
    # single interleave scatter: phase columns -> upsampled (B, 2D, 2H, 2W, Cout)
    o = (o.reshape(B, D, H, W, 2, 2, 2, Cout)
          .transpose(0, 1, 4, 2, 5, 3, 6, 7)
          .reshape(B, 2 * D, 2 * H, 2 * W, Cout))
    return o


# --------------------------------- hourglass -------------------------------------

def hourglass_forward(prep, x, presqu=None, postsqu=None):
    to_cl = lambda t: t.transpose(0, 2, 3, 4, 1)
    to_ncdhw = lambda t: t.transpose(0, 4, 1, 2, 3)

    xcl = to_cl(x)
    presqu_cl = to_cl(presqu) if presqu is not None else None
    postsqu_cl = to_cl(postsqu) if postsqu is not None else None

    out = convbn_3d_cl(xcl, prep['l1'], stride=2, relu=True)                          # conv1
    pre = convbn_3d_cl(out, prep['l2'], stride=1, relu=True, residual_cl=postsqu_cl)  # conv2 (+postsqu)+relu
    out = convbn_3d_cl(pre, prep['l3'], stride=2, relu=True)                          # conv3
    out = convbn_3d_cl(out, prep['l4'], stride=1, relu=True)                          # conv4
    res5 = presqu_cl if presqu is not None else pre
    post = deconvbn_3d_cl(out, prep['l5'], relu=True, residual_cl=res5)               # conv5 (+res)+relu
    out = deconvbn_3d_cl(post, prep['l6'], relu=False, out_dtype=jnp.float32)         # conv6
    # module boundary is f32 NCDHW; internal streams stay bf16
    return (to_ncdhw(out),
            to_ncdhw(pre).astype(jnp.float32),
            to_ncdhw(post).astype(jnp.float32))


# --------------------------- pure-JAX reference (check) --------------------------

def _ref_conv(x, w, stride):
    return lax.conv_general_dilated(
        x, w, (stride,) * 3, [(1, 1)] * 3,
        dimension_numbers=('NCDHW', 'OIDHW', 'NCDHW'),
        precision=lax.Precision.HIGHEST)


def _ref_deconv(x, w_t):
    w_eq = jnp.flip(w_t, axis=(2, 3, 4)).transpose(1, 0, 2, 3, 4)
    return lax.conv_general_dilated(
        x, w_eq, (1, 1, 1), [(1, 2)] * 3, lhs_dilation=(2, 2, 2),
        dimension_numbers=('NCDHW', 'OIDHW', 'NCDHW'),
        precision=lax.Precision.HIGHEST)


def _ref_bn(y, bn):
    scale, bias = _bn_scale_bias(bn)
    return y * scale[None, :, None, None, None] + bias[None, :, None, None, None]


def ref_forward(p, x, presqu=None, postsqu=None):
    out = jax.nn.relu(_ref_bn(_ref_conv(x, p['w1'], 2), p['bn1']))
    pre = _ref_bn(_ref_conv(out, p['w2'], 1), p['bn2'])
    pre = jax.nn.relu(pre + postsqu) if postsqu is not None else jax.nn.relu(pre)
    out = jax.nn.relu(_ref_bn(_ref_conv(pre, p['w3'], 2), p['bn3']))
    out = jax.nn.relu(_ref_bn(_ref_conv(out, p['w4'], 1), p['bn4']))
    res5 = presqu if presqu is not None else pre
    post = jax.nn.relu(_ref_bn(_ref_deconv(out, p['w5']), p['bn5']) + res5)
    out = _ref_bn(_ref_deconv(post, p['w6']), p['bn6'])
    return out, pre, post


# ------------------------------- parameters --------------------------------------

def init_params(key, inplanes):
    C, C2 = inplanes, inplanes * 2
    ks = jax.random.split(key, 12)

    def conv_w(k, co, ci):          # nn.Conv3d weight: (Cout, Cin, 3, 3, 3)
        return jax.random.normal(k, (co, ci, 3, 3, 3), jnp.float32) * 0.05

    def deconv_w(k, ci, co):        # nn.ConvTranspose3d weight: (Cin, Cout, 3, 3, 3)
        return jax.random.normal(k, (ci, co, 3, 3, 3), jnp.float32) * 0.05

    def bn(k, c):
        k1, k2, k3, k4 = jax.random.split(k, 4)
        gamma = 1.0 + 0.1 * jax.random.normal(k1, (c,), jnp.float32)
        beta = 0.1 * jax.random.normal(k2, (c,), jnp.float32)
        mean = 0.1 * jax.random.normal(k3, (c,), jnp.float32)
        var = 1.0 + 0.1 * jax.random.uniform(k4, (c,), jnp.float32)
        return gamma, beta, mean, var

    return {
        'w1': conv_w(ks[0], C2, C),   'bn1': bn(ks[1], C2),
        'w2': conv_w(ks[2], C2, C2),  'bn2': bn(ks[3], C2),
        'w3': conv_w(ks[4], C2, C2),  'bn3': bn(ks[5], C2),
        'w4': conv_w(ks[6], C2, C2),  'bn4': bn(ks[7], C2),
        'w5': deconv_w(ks[8], C2, C2), 'bn5': bn(ks[9], C2),
        'w6': deconv_w(ks[10], C2, C), 'bn6': bn(ks[11], C),
    }


if __name__ == "__main__":
    key = jax.random.PRNGKey(0)
    kx, kpre, kpost, kp = jax.random.split(key, 4)

    B, C, D, H, W = 2, 4, 8, 8, 8          # inplanes = 4; cost-volume-like input
    params = init_params(kp, C)
    x = jax.random.normal(kx, (B, C, D, H, W), jnp.float32)
    presqu = jax.random.normal(kpre, (B, 2 * C, D // 2, H // 2, W // 2), jnp.float32)
    postsqu = jax.random.normal(kpost, (B, 2 * C, D // 2, H // 2, W // 2), jnp.float32)

    prep = prepare_params(params)          # one-time weight prep, outside the step
    fwd = jax.jit(hourglass_forward)

    for ps, qs in [(presqu, postsqu), (None, None)]:
        outs = jax.block_until_ready(fwd(prep, x, ps, qs))
        refs = ref_forward(params, x, ps, qs)
        # tolerance covers the bf16 activation / weight / intermediate streams
        # (MXU accumulation, BN, residual add and ReLU are all f32 in-kernel).
        for o, r in zip(outs, refs):
            np.testing.assert_allclose(np.asarray(o), np.asarray(r), rtol=3e-2, atol=3e-2)

    print("KERNEL_OK")
</pallas_src>

<mosaic_0001>
module attributes {stable_mosaic.version = 11 : i64} {
  func.func @kernel(%arg0: i32, %arg1: memref<64x108xbf16, #tpu.memory_space<vmem>>, %arg2: memref<108x8xbf16, #tpu.memory_space<vmem>>, %arg3: memref<1x8xf32, #tpu.memory_space<vmem>>, %arg4: memref<1x8xf32, #tpu.memory_space<vmem>>, %arg5: memref<64x8xbf16, #tpu.memory_space<vmem>>) attributes {dimension_semantics = [#tpu.dimension_semantics<parallel>], iteration_bounds = array<i64: 2>, scalar_prefetch = 0 : i64, scratch_operands = 0 : i64, tpu.core_type = #tpu.core_type<tc>, window_params = [{transform_indices = @transform_0, window_bounds = array<i64: 64, 108>}, {pipeline_mode = #tpu.pipeline_mode<synchronous>, transform_indices = @transform_1, window_bounds = array<i64: 108, 8>}, {pipeline_mode = #tpu.pipeline_mode<synchronous>, transform_indices = @transform_2, window_bounds = array<i64: 1, 8>}, {pipeline_mode = #tpu.pipeline_mode<synchronous>, transform_indices = @transform_3, window_bounds = array<i64: 1, 8>}, {transform_indices = @transform_4, window_bounds = array<i64: 64, 8>}]} {
    %c0 = arith.constant 0 : index
    %c0_0 = arith.constant 0 : index
    %0 = vector.load %arg1[%c0, %c0_0] : memref<64x108xbf16, #tpu.memory_space<vmem>>, vector<64x108xbf16>
    %c0_1 = arith.constant 0 : index
    %c0_2 = arith.constant 0 : index
    %1 = vector.load %arg2[%c0_1, %c0_2] : memref<108x8xbf16, #tpu.memory_space<vmem>>, vector<108x8xbf16>
    %cst = arith.constant dense<0.000000e+00> : vector<64x8xf32>
    %2 = tpu.matmul %0, %1, %cst {dimension_numbers = #tpu.dot_dimension_numbers<[1], [0], [0], [1], [0, 0, 1, 1], [], []>} : vector<64x108xbf16>, vector<108x8xbf16>, vector<64x8xf32> -> vector<64x8xf32>
    %c0_3 = arith.constant 0 : index
    %c0_4 = arith.constant 0 : index
    %3 = vector.load %arg3[%c0_3, %c0_4] : memref<1x8xf32, #tpu.memory_space<vmem>>, vector<1x8xf32>
    %4 = vector.broadcast %3 : vector<1x8xf32> to vector<64x8xf32>
    %5 = arith.mulf %2, %4 : vector<64x8xf32>
    %c0_5 = arith.constant 0 : index
    %c0_6 = arith.constant 0 : index
    %6 = vector.load %arg4[%c0_5, %c0_6] : memref<1x8xf32, #tpu.memory_space<vmem>>, vector<1x8xf32>
    %7 = vector.broadcast %6 : vector<1x8xf32> to vector<64x8xf32>
    %8 = arith.addf %5, %7 : vector<64x8xf32>
    %cst_7 = arith.constant 0.000000e+00 : f32
    %9 = vector.broadcast %cst_7 : f32 to vector<64x8xf32>
    %10 = arith.maximumf %8, %9 : vector<64x8xf32>
    %11 = arith.truncf %10 : vector<64x8xf32> to vector<64x8xbf16>
    %c0_8 = arith.constant 0 : index
    %c0_9 = arith.constant 0 : index
    %12 = vector.load %arg5[%c0_8, %c0_9] : memref<64x8xbf16, #tpu.memory_space<vmem>>, vector<64x8xbf16>
    tpu.vector_store %arg5[%c0_8, %c0_9], %11 {strides = array<i32>} : memref<64x8xbf16, #tpu.memory_space<vmem>>, vector<64x8xbf16>,
    return
  }
  func.func @transform_0(%arg0: i32) -> (i32, i32) {
    %c0_i32 = arith.constant 0 : i32
    %c0_i32_0 = arith.constant 0 : i32
    return %arg0, %c0_i32 : i32, i32
  }
  func.func @transform_1(%arg0: i32) -> (i32, i32) {
    %c0_i32 = arith.constant 0 : i32
    %c0_i32_0 = arith.constant 0 : i32
    %c0_i32_1 = arith.constant 0 : i32
    return %c0_i32, %c0_i32_0 : i32, i32
  }
  func.func @transform_2(%arg0: i32) -> (i32, i32) {
    %c0_i32 = arith.constant 0 : i32
    %c0_i32_0 = arith.constant 0 : i32
    %c0_i32_1 = arith.constant 0 : i32
    return %c0_i32, %c0_i32_0 : i32, i32
  }
  func.func @transform_3(%arg0: i32) -> (i32, i32) {
    %c0_i32 = arith.constant 0 : i32
    %c0_i32_0 = arith.constant 0 : i32
    %c0_i32_1 = arith.constant 0 : i32
    return %c0_i32, %c0_i32_0 : i32, i32
  }
  func.func @transform_4(%arg0: i32) -> (i32, i32) {
    %c0_i32 = arith.constant 0 : i32
    %c0_i32_0 = arith.constant 0 : i32
    return %arg0, %c0_i32 : i32, i32
  }
}

module attributes {stable_mosaic.version = 11 : i64} {
  func.func @kernel(%arg0: i32, %arg1: memref<64x216xbf16, #tpu.memory_space<vmem>>, %arg2: memref<216x8xbf16, #tpu.memory_space<vmem>>, %arg3: memref<1x8xf32, #tpu.memory_space<vmem>>, %arg4: memref<1x8xf32, #tpu.memory_space<vmem>>, %arg5: memref<64x8xf32, #tpu.memory_space<vmem>>, %arg6: memref<64x8xbf16, #tpu.memory_space<vmem>>) attributes {dimension_semantics = [#tpu.dimension_semantics<parallel>], iteration_bounds = array<i64: 2>, scalar_prefetch = 0 : i64, scratch_operands = 0 : i64, tpu.core_type = #tpu.core_type<tc>, window_params = [{transform_indices = @transform_0, window_bounds = array<i64: 64, 216>}, {pipeline_mode = #tpu.pipeline_mode<synchronous>, transform_indices = @transform_1, window_bounds = array<i64: 216, 8>}, {pipeline_mode = #tpu.pipeline_mode<synchronous>, transform_indices = @transform_2, window_bounds = array<i64: 1, 8>}, {pipeline_mode = #tpu.pipeline_mode<synchronous>, transform_indices = @transform_3, window_bounds = array<i64: 1, 8>}, {transform_indices = @transform_4, window_bounds = array<i64: 64, 8>}, {transform_indices = @transform_5, window_bounds = array<i64: 64, 8>}]} {
    %c0 = arith.constant 0 : index
    %c0_0 = arith.constant 0 : index
    %0 = vector.load %arg1[%c0, %c0_0] : memref<64x216xbf16, #tpu.memory_space<vmem>>, vector<64x216xbf16>
    %c0_1 = arith.constant 0 : index
    %c0_2 = arith.constant 0 : index
    %1 = vector.load %arg2[%c0_1, %c0_2] : memref<216x8xbf16, #tpu.memory_space<vmem>>, vector<216x8xbf16>
    %cst = arith.constant dense<0.000000e+00> : vector<64x8xf32>
    %2 = tpu.matmul %0, %1, %cst {dimension_numbers = #tpu.dot_dimension_numbers<[1], [0], [0], [1], [0, 0, 1, 1], [], []>} : vector<64x216xbf16>, vector<216x8xbf16>, vector<64x8xf32> -> vector<64x8xf32>
    %c0_3 = arith.constant 0 : index
    %c0_4 = arith.constant 0 : index
    %3 = vector.load %arg3[%c0_3, %c0_4] : memref<1x8xf32, #tpu.memory_space<vmem>>, vector<1x8xf32>
    %4 = vector.broadcast %3 : vector<1x8xf32> to vector<64x8xf32>
    %5 = arith.mulf %2, %4 : vector<64x8xf32>
    %c0_5 = arith.constant 0 : index
    %c0_6 = arith.constant 0 : index
    %6 = vector.load %arg4[%c0_5, %c0_6] : memref<1x8xf32, #tpu.memory_space<vmem>>, vector<1x8xf32>
    %7 = vector.broadcast %6 : vector<1x8xf32> to vector<64x8xf32>
    %8 = arith.addf %5, %7 : vector<64x8xf32>
    %c0_7 = arith.constant 0 : index
    %c0_8 = arith.constant 0 : index
    %9 = vector.load %arg5[%c0_7, %c0_8] : memref<64x8xf32, #tpu.memory_space<vmem>>, vector<64x8xf32>
    %10 = arith.addf %8, %9 : vector<64x8xf32>
    %cst_9 = arith.constant 0.000000e+00 : f32
    %11 = vector.broadcast %cst_9 : f32 to vector<64x8xf32>
    %12 = arith.maximumf %10, %11 : vector<64x8xf32>
    %13 = arith.truncf %12 : vector<64x8xf32> to vector<64x8xbf16>
    %c0_10 = arith.constant 0 : index
    %c0_11 = arith.constant 0 : index
    %14 = vector.load %arg6[%c0_10, %c0_11] : memref<64x8xbf16, #tpu.memory_space<vmem>>, vector<64x8xbf16>
    tpu.vector_store %arg6[%c0_10, %c0_11], %13 {strides = array<i32>} : memref<64x8xbf16, #tpu.memory_space<vmem>>, vector<64x8xbf16>,
    return
  }
  func.func @transform_0(%arg0: i32) -> (i32, i32) {
    %c0_i32 = arith.constant 0 : i32
    %c0_i32_0 = arith.constant 0 : i32
    return %arg0, %c0_i32 : i32, i32
  }
  func.func @transform_1(%arg0: i32) -> (i32, i32) {
    %c0_i32 = arith.constant 0 : i32
    %c0_i32_0 = arith.constant 0 : i32
    %c0_i32_1 = arith.constant 0 : i32
    return %c0_i32, %c0_i32_0 : i32, i32
  }
  func.func @transform_2(%arg0: i32) -> (i32, i32) {
    %c0_i32 = arith.constant 0 : i32
    %c0_i32_0 = arith.constant 0 : i32
    %c0_i32_1 = arith.constant 0 : i32
    return %c0_i32, %c0_i32_0 : i32, i32
  }
  func.func @transform_3(%arg0: i32) -> (i32, i32) {
    %c0_i32 = arith.constant 0 : i32
    %c0_i32_0 = arith.constant 0 : i32
    %c0_i32_1 = arith.constant 0 : i32
    return %c0_i32, %c0_i32_0 : i32, i32
  }
  func.func @transform_4(%arg0: i32) -> (i32, i32) {
    %c0_i32 = arith.constant 0 : i32
    %c0_i32_0 = arith.constant 0 : i32
    return %arg0, %c0_i32 : i32, i32
  }
  func.func @transform_5(%arg0: i32) -> (i32, i32) {
    %c0_i32 = arith.constant 0 : i32
    %c0_i32_0 = arith.constant 0 : i32
    return %arg0, %c0_i32 : i32, i32
  }
}

module attributes {stable_mosaic.version = 11 : i64} {
  func.func @kernel(%arg0: i32, %arg1: memref<8x216xbf16, #tpu.memory_space<vmem>>, %arg2: memref<216x8xbf16, #tpu.memory_space<vmem>>, %arg3: memref<1x8xf32, #tpu.memory_space<vmem>>, %arg4: memref<1x8xf32, #tpu.memory_space<vmem>>, %arg5: memref<8x8xbf16, #tpu.memory_space<vmem>>) attributes {dimension_semantics = [#tpu.dimension_semantics<parallel>], iteration_bounds = array<i64: 2>, scalar_prefetch = 0 : i64, scratch_operands = 0 : i64, tpu.core_type = #tpu.core_type<tc>, window_params = [{transform_indices = @transform_0, window_bounds = array<i64: 8, 216>}, {pipeline_mode = #tpu.pipeline_mode<synchronous>, transform_indices = @transform_1, window_bounds = array<i64: 216, 8>}, {pipeline_mode = #tpu.pipeline_mode<synchronous>, transform_indices = @transform_2, window_bounds = array<i64: 1, 8>}, {pipeline_mode = #tpu.pipeline_mode<synchronous>, transform_indices = @transform_3, window_bounds = array<i64: 1, 8>}, {transform_indices = @transform_4, window_bounds = array<i64: 8, 8>}]} {
    %c0 = arith.constant 0 : index
    %c0_0 = arith.constant 0 : index
    %0 = vector.load %arg1[%c0, %c0_0] : memref<8x216xbf16, #tpu.memory_space<vmem>>, vector<8x216xbf16>
    %c0_1 = arith.constant 0 : index
    %c0_2 = arith.constant 0 : index
    %1 = vector.load %arg2[%c0_1, %c0_2] : memref<216x8xbf16, #tpu.memory_space<vmem>>, vector<216x8xbf16>
    %cst = arith.constant dense<0.000000e+00> : vector<8x8xf32>
    %2 = tpu.matmul %0, %1, %cst {dimension_numbers = #tpu.dot_dimension_numbers<[1], [0], [0], [1], [0, 0, 1, 1], [], []>} : vector<8x216xbf16>, vector<216x8xbf16>, vector<8x8xf32> -> vector<8x8xf32>
    %c0_3 = arith.constant 0 : index
    %c0_4 = arith.constant 0 : index
    %3 = vector.load %arg3[%c0_3, %c0_4] : memref<1x8xf32, #tpu.memory_space<vmem>>, vector<1x8xf32>
    %4 = vector.broadcast %3 : vector<1x8xf32> to vector<8x8xf32>
    %5 = arith.mulf %2, %4 : vector<8x8xf32>
    %c0_5 = arith.constant 0 : index
    %c0_6 = arith.constant 0 : index
    %6 = vector.load %arg4[%c0_5, %c0_6] : memref<1x8xf32, #tpu.memory_space<vmem>>, vector<1x8xf32>
    %7 = vector.broadcast %6 : vector<1x8xf32> to vector<8x8xf32>
    %8 = arith.addf %5, %7 : vector<8x8xf32>
    %cst_7 = arith.constant 0.000000e+00 : f32
    %9 = vector.broadcast %cst_7 : f32 to vector<8x8xf32>
    %10 = arith.maximumf %8, %9 : vector<8x8xf32>
    %11 = arith.truncf %10 : vector<8x8xf32> to vector<8x8xbf16>
    %c0_8 = arith.constant 0 : index
    %c0_9 = arith.constant 0 : index
    %12 = vector.load %arg5[%c0_8, %c0_9] : memref<8x8xbf16, #tpu.memory_space<vmem>>, vector<8x8xbf16>
    tpu.vector_store %arg5[%c0_8, %c0_9], %11 {strides = array<i32>} : memref<8x8xbf16, #tpu.memory_space<vmem>>, vector<8x8xbf16>,
    return
  }
  func.func @transform_0(%arg0: i32) -> (i32, i32) {
    %c0_i32 = arith.constant 0 : i32
    %c0_i32_0 = arith.constant 0 : i32
    return %arg0, %c0_i32 : i32, i32
  }
  func.func @transform_1(%arg0: i32) -> (i32, i32) {
    %c0_i32 = arith.constant 0 : i32
    %c0_i32_0 = arith.constant 0 : i32
    %c0_i32_1 = arith.constant 0 : i32
    return %c0_i32, %c0_i32_0 : i32, i32
  }
  func.func @transform_2(%arg0: i32) -> (i32, i32) {
    %c0_i32 = arith.constant 0 : i32
    %c0_i32_0 = arith.constant 0 : i32
    %c0_i32_1 = arith.constant 0 : i32
    return %c0_i32, %c0_i32_0 : i32, i32
  }
  func.func @transform_3(%arg0: i32) -> (i32, i32) {
    %c0_i32 = arith.constant 0 : i32
    %c0_i32_0 = arith.constant 0 : i32
    %c0_i32_1 = arith.constant 0 : i32
    return %c0_i32, %c0_i32_0 : i32, i32
  }
  func.func @transform_4(%arg0: i32) -> (i32, i32) {
    %c0_i32 = arith.constant 0 : i32
    %c0_i32_0 = arith.constant 0 : i32
    return %arg0, %c0_i32 : i32, i32
  }
}

module attributes {stable_mosaic.version = 11 : i64} {
  func.func @kernel(%arg0: i32, %arg1: memref<8x64xbf16, #tpu.memory_space<vmem>>, %arg2: memref<64x64xbf16, #tpu.memory_space<vmem>>, %arg3: memref<1x64xf32, #tpu.memory_space<vmem>>, %arg4: memref<1x64xf32, #tpu.memory_space<vmem>>, %arg5: memref<8x64xf32, #tpu.memory_space<vmem>>, %arg6: memref<8x64xbf16, #tpu.memory_space<vmem>>) attributes {dimension_semantics = [#tpu.dimension_semantics<parallel>], iteration_bounds = array<i64: 2>, scalar_prefetch = 0 : i64, scratch_operands = 0 : i64, tpu.core_type = #tpu.core_type<tc>, window_params = [{transform_indices = @transform_0, window_bounds = array<i64: 8, 64>}, {pipeline_mode = #tpu.pipeline_mode<synchronous>, transform_indices = @transform_1, window_bounds = array<i64: 64, 64>}, {pipeline_mode = #tpu.pipeline_mode<synchronous>, transform_indices = @transform_2, window_bounds = array<i64: 1, 64>}, {pipeline_mode = #tpu.pipeline_mode<synchronous>, transform_indices = @transform_3, window_bounds = array<i64: 1, 64>}, {transform_indices = @transform_4, window_bounds = array<i64: 8, 64>}, {transform_indices = @transform_5, window_bounds = array<i64: 8, 64>}]} {
    %c0 = arith.constant 0 : index
    %c0_0 = arith.constant 0 : index
    %0 = vector.load %arg1[%c0, %c0_0] : memref<8x64xbf16, #tpu.memory_space<vmem>>, vector<8x64xbf16>
    %c0_1 = arith.constant 0 : index
    %c0_2 = arith.constant 0 : index
    %1 = vector.load %arg2[%c0_1, %c0_2] : memref<64x64xbf16, #tpu.memory_space<vmem>>, vector<64x64xbf16>
    %cst = arith.constant dense<0.000000e+00> : vector<8x64xf32>
    %2 = tpu.matmul %0, %1, %cst {dimension_numbers = #tpu.dot_dimension_numbers<[1], [0], [0], [1], [0, 0, 1, 1], [], []>} : vector<8x64xbf16>, vector<64x64xbf16>, vector<8x64xf32> -> vector<8x64xf32>
    %c0_3 = arith.constant 0 : index
    %c0_4 = arith.constant 0 : index
    %3 = vector.load %arg3[%c0_3, %c0_4] : memref<1x64xf32, #tpu.memory_space<vmem>>, vector<1x64xf32>
    %4 = vector.broadcast %3 : vector<1x64xf32> to vector<8x64xf32>
    %5 = arith.mulf %2, %4 : vector<8x64xf32>
    %c0_5 = arith.constant 0 : index
    %c0_6 = arith.constant 0 : index
    %6 = vector.load %arg4[%c0_5, %c0_6] : memref<1x64xf32, #tpu.memory_space<vmem>>, vector<1x64xf32>
    %7 = vector.broadcast %6 : vector<1x64xf32> to vector<8x64xf32>
    %8 = arith.addf %5, %7 : vector<8x64xf32>
    %c0_7 = arith.constant 0 : index
    %c0_8 = arith.constant 0 : index
    %9 = vector.load %arg5[%c0_7, %c0_8] : memref<8x64xf32, #tpu.memory_space<vmem>>, vector<8x64xf32>
    %10 = arith.addf %8, %9 : vector<8x64xf32>
    %cst_9 = arith.constant 0.000000e+00 : f32
    %11 = vector.broadcast %cst_9 : f32 to vector<8x64xf32>
    %12 = arith.maximumf %10, %11 : vector<8x64xf32>
    %13 = arith.truncf %12 : vector<8x64xf32> to vector<8x64xbf16>
    %c0_10 = arith.constant 0 : index
    %c0_11 = arith.constant 0 : index
    %14 = vector.load %arg6[%c0_10, %c0_11] : memref<8x64xbf16, #tpu.memory_space<vmem>>, vector<8x64xbf16>
    tpu.vector_store %arg6[%c0_10, %c0_11], %13 {strides = array<i32>} : memref<8x64xbf16, #tpu.memory_space<vmem>>, vector<8x64xbf16>,
    return
  }
  func.func @transform_0(%arg0: i32) -> (i32, i32) {
    %c0_i32 = arith.constant 0 : i32
    %c0_i32_0 = arith.constant 0 : i32
    return %arg0, %c0_i32 : i32, i32
  }
  func.func @transform_1(%arg0: i32) -> (i32, i32) {
    %c0_i32 = arith.constant 0 : i32
    %c0_i32_0 = arith.constant 0 : i32
    %c0_i32_1 = arith.constant 0 : i32
    return %c0_i32, %c0_i32_0 : i32, i32
  }
  func.func @transform_2(%arg0: i32) -> (i32, i32) {
    %c0_i32 = arith.constant 0 : i32
    %c0_i32_0 = arith.constant 0 : i32
    %c0_i32_1 = arith.constant 0 : i32
    return %c0_i32, %c0_i32_0 : i32, i32
  }
  func.func @transform_3(%arg0: i32) -> (i32, i32) {
    %c0_i32 = arith.constant 0 : i32
    %c0_i32_0 = arith.constant 0 : i32
    %c0_i32_1 = arith.constant 0 : i32
    return %c0_i32, %c0_i32_0 : i32, i32
  }
  func.func @transform_4(%arg0: i32) -> (i32, i32) {
    %c0_i32 = arith.constant 0 : i32
    %c0_i32_0 = arith.constant 0 : i32
    return %arg0, %c0_i32 : i32, i32
  }
  func.func @transform_5(%arg0: i32) -> (i32, i32) {
    %c0_i32 = arith.constant 0 : i32
    %c0_i32_0 = arith.constant 0 : i32
    return %arg0, %c0_i32 : i32, i32
  }
}

module attributes {stable_mosaic.version = 11 : i64} {
  func.func @kernel(%arg0: i32, %arg1: memref<64x64xbf16, #tpu.memory_space<vmem>>, %arg2: memref<64x32xbf16, #tpu.memory_space<vmem>>, %arg3: memref<1x32xf32, #tpu.memory_space<vmem>>, %arg4: memref<1x32xf32, #tpu.memory_space<vmem>>, %arg5: memref<64x32xf32, #tpu.memory_space<vmem>>) attributes {dimension_semantics = [#tpu.dimension_semantics<parallel>], iteration_bounds = array<i64: 2>, scalar_prefetch = 0 : i64, scratch_operands = 0 : i64, tpu.core_type = #tpu.core_type<tc>, window_params = [{transform_indices = @transform_0, window_bounds = array<i64: 64, 64>}, {pipeline_mode = #tpu.pipeline_mode<synchronous>, transform_indices = @transform_1, window_bounds = array<i64: 64, 32>}, {pipeline_mode = #tpu.pipeline_mode<synchronous>, transform_indices = @transform_2, window_bounds = array<i64: 1, 32>}, {pipeline_mode = #tpu.pipeline_mode<synchronous>, transform_indices = @transform_3, window_bounds = array<i64: 1, 32>}, {transform_indices = @transform_4, window_bounds = array<i64: 64, 32>}]} {
    %c0 = arith.constant 0 : index
    %c0_0 = arith.constant 0 : index
    %0 = vector.load %arg1[%c0, %c0_0] : memref<64x64xbf16, #tpu.memory_space<vmem>>, vector<64x64xbf16>
    %c0_1 = arith.constant 0 : index
    %c0_2 = arith.constant 0 : index
    %1 = vector.load %arg2[%c0_1, %c0_2] : memref<64x32xbf16, #tpu.memory_space<vmem>>, vector<64x32xbf16>
    %cst = arith.constant dense<0.000000e+00> : vector<64x32xf32>
    %2 = tpu.matmul %0, %1, %cst {dimension_numbers = #tpu.dot_dimension_numbers<[1], [0], [0], [1], [0, 0, 1, 1], [], []>} : vector<64x64xbf16>, vector<64x32xbf16>, vector<64x32xf32> -> vector<64x32xf32>
    %c0_3 = arith.constant 0 : index
    %c0_4 = arith.constant 0 : index
    %3 = vector.load %arg3[%c0_3, %c0_4] : memref<1x32xf32, #tpu.memory_space<vmem>>, vector<1x32xf32>
    %4 = vector.broadcast %3 : vector<1x32xf32> to vector<64x32xf32>
    %5 = arith.mulf %2, %4 : vector<64x32xf32>
    %c0_5 = arith.constant 0 : index
    %c0_6 = arith.constant 0 : index
    %6 = vector.load %arg4[%c0_5, %c0_6] : memref<1x32xf32, #tpu.memory_space<vmem>>, vector<1x32xf32>
    %7 = vector.broadcast %6 : vector<1x32xf32> to vector<64x32xf32>
    %8 = arith.addf %5, %7 : vector<64x32xf32>
    %c0_7 = arith.constant 0 : index
    %c0_8 = arith.constant 0 : index
    %9 = vector.load %arg5[%c0_7, %c0_8] : memref<64x32xf32, #tpu.memory_space<vmem>>, vector<64x32xf32>
    tpu.vector_store %arg5[%c0_7, %c0_8], %8 {strides = array<i32>} : memref<64x32xf32, #tpu.memory_space<vmem>>, vector<64x32xf32>,
    return
  }
  func.func @transform_0(%arg0: i32) -> (i32, i32) {
    %c0_i32 = arith.constant 0 : i32
    %c0_i32_0 = arith.constant 0 : i32
    return %arg0, %c0_i32 : i32, i32
  }
  func.func @transform_1(%arg0: i32) -> (i32, i32) {
    %c0_i32 = arith.constant 0 : i32
    %c0_i32_0 = arith.constant 0 : i32
    %c0_i32_1 = arith.constant 0 : i32
    return %c0_i32, %c0_i32_0 : i32, i32
  }
  func.func @transform_2(%arg0: i32) -> (i32, i32) {
    %c0_i32 = arith.constant 0 : i32
    %c0_i32_0 = arith.constant 0 : i32
    %c0_i32_1 = arith.constant 0 : i32
    return %c0_i32, %c0_i32_0 : i32, i32
  }
  func.func @transform_3(%arg0: i32) -> (i32, i32) {
    %c0_i32 = arith.constant 0 : i32
    %c0_i32_0 = arith.constant 0 : i32
    %c0_i32_1 = arith.constant 0 : i32
    return %c0_i32, %c0_i32_0 : i32, i32
  }
  func.func @transform_4(%arg0: i32) -> (i32, i32) {
    %c0_i32 = arith.constant 0 : i32
    %c0_i32_0 = arith.constant 0 : i32
    return %arg0, %c0_i32 : i32, i32
  }
}

</mosaic_0001>

<llo_original>
// kernel: hourglass_forward.6
$region0: #{hourglass_forward.6}
  #allocation0 [shape = 'u32[]', space=smem, size = 0x4, offset = 0x4, fixed_abs, tag = 'smem constant byte address 0x4 - core index']
  #allocation1 [shape = 'u32[144,128]{1,0:T(1,128)}', space=vmem, size = 0x12000, scoped, tag = 'internal scratch']
  %s0 = inlined_call_operand.vmem [shape: bf16[128,108], index: 0, kind: input, shape index: {}]
  %s1 = inlined_call_operand.vmem [shape: bf16[108,8], index: 1, kind: input, shape index: {}]
  %s2 = inlined_call_operand.vmem [shape: f32[1,8], index: 2, kind: input, shape index: {}]
  %s3 = inlined_call_operand.vmem [shape: f32[1,8], index: 3, kind: input, shape index: {}]
  %s4 = inlined_call_operand.vmem [shape: bf16[128,8], index: 4, kind: output, shape index: {}]
  %s5 = sld [smem:[#allocation0]]
  $region49: #{hourglass_forward.6} parent=0
    _
  %s7 = ssub.s32 1, %s5
  %s8 = scalar_select 0, %s7, %s5
  loop: start=0, step=1, limit=4
  $region2: #{hourglass_forward.6} parent=0 // loop_pre_header
    _
  $region3: #{hourglass_forward.6} parent=0 // loop_header
    %s10 = sphi 0, %s14
    %p11 = scmp.ge.s32.totalorder %s10, 4
    %s20 = sphi 0, %s22
    %s23 = sphi 0, %s20
    %s24 = sphi 0, %s23
    %s40 = sphi 0, %s24
    %s44 = sphi 0, %s44
    %s46 = sphi 0, %s44
    %s47 = sphi 0, %s46
    %s61 = sphi 0, %s47
    %s65 = sphi 0, %s65
    %s67 = sphi 0, %s65
    %s68 = sphi 0, %s67
    %s82 = sphi 0, %s68
    %s86 = sphi 0, %s86
    %s88 = sphi 0, %s86
    %s89 = sphi 0, %s88
    %s103 = sphi 0, %s89
    %s109 = sphi 0, %s111
    %s112 = sphi 0, %s109
    %s113 = sphi 0, %s112
    %s129 = sphi 0, %s113
  $region4: #{hourglass_forward.6} parent=0 // loop_header_branch
    %13 = sbr.rel (%p11) target = $region8
  $region5: #{hourglass_forward.6} parent=0 // loop_body
    %s15 = ssub.s32 %s10, 1
    %s16 = ssub.s32 %s10, 2
    %s17 = sadd.s32 %s10, 1
    %s18 = ssub.s32 %s10, %s17
    %p19 = scmp.eq.s32.totalorder %s18, 0
    %s21 = sadd.s32 %s20, 1
    %s22 = scalar_select %p19, %s20, %s21
    %p25 = pneg %p19
    %p26 = scmp.eq.s32.totalorder %s10, 1
    %p27 = por %p25, %p26
    %p28 = scmp.ne.s32.totalorder %s20, %s23
    %p29 = scmp.eq.s32.totalorder %s10, 0
    %p30 = por %p28, %p29
    %p31 = scmp.ne.s32.totalorder %s20, %s23
    %p32 = scmp.eq.s32.totalorder %s15, 1
    %p33 = por %p31, %p32
    %p34 = scmp.ne.s32.totalorder %s23, %s24
    %p35 = scmp.eq.s32.totalorder %s15, 0
    %p36 = por %p34, %p35
    %p37 = scmp.ne.s32.totalorder %s23, %s24
    %p38 = scmp.eq.s32.totalorder %s16, 1
    %p39 = por %p37, %p38
    %p41 = scmp.ne.s32.totalorder %s24, %s40
    %p42 = scmp.eq.s32.totalorder %s16, 0
    %p43 = por %p41, %p42
    %s45 = sadd.s32 %s44, 1
    %p48 = scmp.eq.s32.totalorder %s10, 1
    %p49 = scmp.ne.s32.totalorder %s44, %s46
    %p50 = scmp.eq.s32.totalorder %s10, 0
    %p51 = por %p49, %p50
    %p52 = scmp.ne.s32.totalorder %s44, %s46
    %p53 = scmp.eq.s32.totalorder %s15, 1
    %p54 = por %p52, %p53
    %p55 = scmp.ne.s32.totalorder %s46, %s47
    %p56 = scmp.eq.s32.totalorder %s15, 0
    %p57 = por %p55, %p56
    %p58 = scmp.ne.s32.totalorder %s46, %s47
    %p59 = scmp.eq.s32.totalorder %s16, 1
    %p60 = por %p58, %p59
    %p62 = scmp.ne.s32.totalorder %s47, %s61
    %p63 = scmp.eq.s32.totalorder %s16, 0
    %p64 = por %p62, %p63
    %s66 = sadd.s32 %s65, 1
    %p69 = scmp.eq.s32.totalorder %s10, 1
    %p70 = scmp.ne.s32.totalorder %s65, %s67
    %p71 = scmp.eq.s32.totalorder %s10, 0
    %p72 = por %p70, %p71
    %p73 = scmp.ne.s32.totalorder %s65, %s67
    %p74 = scmp.eq.s32.totalorder %s15, 1
    %p75 = por %p73, %p74
    %p76 = scmp.ne.s32.totalorder %s67, %s68
    %p77 = scmp.eq.s32.totalorder %s15, 0
    %p78 = por %p76, %p77
    %p79 = scmp.ne.s32.totalorder %s67, %s68
    %p80 = scmp.eq.s32.totalorder %s16, 1
    %p81 = por %p79, %p80
    %p83 = scmp.ne.s32.totalorder %s68, %s82
    %p84 = scmp.eq.s32.totalorder %s16, 0
    %p85 = por %p83, %p84
    %s87 = sadd.s32 %s86, 1
    %p90 = scmp.eq.s32.totalorder %s10, 1
    %p91 = scmp.ne.s32.totalorder %s86, %s88
    %p92 = scmp.eq.s32.totalorder %s10, 0
    %p93 = por %p91, %p92
    %p94 = scmp.ne.s32.totalorder %s86, %s88
    %p95 = scmp.eq.s32.totalorder %s15, 1
    %p96 = por %p94, %p95
    %p97 = scmp.ne.s32.totalorder %s88, %s89
    %p98 = scmp.eq.s32.totalorder %s15, 0
    %p99 = por %p97, %p98
    %p100 = scmp.ne.s32.totalorder %s88, %s89
    %p101 = scmp.eq.s32.totalorder %s16, 1
    %p102 = por %p100, %p101
    %p104 = scmp.ne.s32.totalorder %s89, %s103
    %p105 = scmp.eq.s32.totalorder %s16, 0
    %p106 = por %p104, %p105
    %s107 = ssub.s32 %s10, %s17
    %p108 = scmp.eq.s32.totalorder %s107, 0
    %s110 = sadd.s32 %s109, 1
    %s111 = scalar_select %p108, %s109, %s110
    %p114 = pneg %p108
    %p115 = scmp.eq.s32.totalorder %s10, 1
    %p116 = por %p114, %p115
    %p117 = scmp.ne.s32.totalorder %s109, %s112
    %p118 = scmp.eq.s32.totalorder %s10, 0
    %p119 = por %p117, %p118
    %p120 = scmp.ne.s32.totalorder %s109, %s112
    %p121 = scmp.eq.s32.totalorder %s15, 1
    %p122 = por %p120, %p121
    %p123 = scmp.ne.s32.totalorder %s112, %s113
    %p124 = scmp.eq.s32.totalorder %s15, 0
    %p125 = por %p123, %p124
    %p126 = scmp.ne.s32.totalorder %s112, %s113
    %p127 = scmp.eq.s32.totalorder %s16, 1
    %p128 = por %p126, %p127
    %p130 = scmp.ne.s32.totalorder %s113, %s129
    %p131 = scmp.eq.s32.totalorder %s16, 0
    %p132 = por %p130, %p131
    %p133 = scmp.le.s32.totalorder 1, %s10
    %p134 = scmp.lt.s32.totalorder %s10, 3
    %p135 = pnand %p133, %p134
    %p136 = pneg %p135
    // Predicated region
    $region9: #{hourglass_forward.6} parent=5 // pred_check
      _
    $region10: #{hourglass_forward.6} parent=5 // pred_check_branch
      %138 = sbr.rel (%p135) target = $region12
    $region11: #{hourglass_forward.6} parent=5 // pred_region
      %s139 = ssub.s32 %s10, 1
      // Predicated region
      $region13: #{hourglass_forward.6} parent=11 // pred_check
        %p140 = pneg %p57
      $region14: #{hourglass_forward.6} parent=11 // pred_check_branch
        %142 = sbr.rel (%p140) target = $region16
      $region15: #{hourglass_forward.6} parent=11 // pred_region
        _
      $region16: #{hourglass_forward.6} parent=11 // pred_fallthru
        _
      // Predicated region
      $region17: #{hourglass_forward.6} parent=11 // pred_check
        %p143 = pneg %p78
      $region18: #{hourglass_forward.6} parent=11 // pred_check_branch
        %145 = sbr.rel (%p143) target = $region20
      $region19: #{hourglass_forward.6} parent=11 // pred_region
        _
      $region20: #{hourglass_forward.6} parent=11 // pred_fallthru
        _
      // Predicated region
      $region21: #{hourglass_forward.6} parent=11 // pred_check
        %p146 = pneg %p99
      $region22: #{hourglass_forward.6} parent=11 // pred_check_branch
        %148 = sbr.rel (%p146) target = $region24
      $region23: #{hourglass_forward.6} parent=11 // pred_region
        _
      $region24: #{hourglass_forward.6} parent=11 // pred_fallthru
        _
    $region12: #{hourglass_forward.6} parent=5 // pred_fallthru
      _
    %p149 = scmp.lt.s32.totalorder %s10, 2
    // Predicated region
    $region25: #{hourglass_forward.6} parent=5 // pred_check
      %p150 = pneg %p149
    $region26: #{hourglass_forward.6} parent=5 // pred_check_branch
      %152 = sbr.rel (%p150) target = $region28
    $region27: #{hourglass_forward.6} parent=5 // pred_region
      // Predicated region
      $region29: #{hourglass_forward.6} parent=27 // pred_check
        %p153 = pneg %p30
      $region30: #{hourglass_forward.6} parent=27 // pred_check_branch
        %155 = sbr.rel (%p153) target = $region32
      $region31: #{hourglass_forward.6} parent=27 // pred_region
        %s156 = smul.u32 8, %s10
        %p157 = scmp.lt.s32.totalorder %s156, 15
        %s158 = scalar_select %p157, %s156, 15
        %s159 = smul.addr %s158, 4
        %s160 = scalar_lea.vmem %s0, %s159
        %s161 = smul.u32 8, %s10
      $region32: #{hourglass_forward.6} parent=27 // pred_fallthru
        _
    $region28: #{hourglass_forward.6} parent=5 // pred_fallthru
      _
    %p162 = scmp.le.s32.totalorder 1, %s10
    %p163 = scmp.lt.s32.totalorder %s10, 3
    %p164 = pnand %p162, %p163
    %p165 = pneg %p164
    // Predicated region
    $region33: #{hourglass_forward.6} parent=5 // pred_check
      _
    $region34: #{hourglass_forward.6} parent=5 // pred_check_branch
      %167 = sbr.rel (%p164) target = $region36
    $region35: #{hourglass_forward.6} parent=5 // pred_region
      %s168 = ssub.s32 %s10, 1
      %s169 = smul.u32 8, %s15
      %p170 = scmp.lt.s32.totalorder %s169, 15
      %s171 = scalar_select %p170, %s169, 15
      %s172 = smul.addr %s171, 4
      %s173 = scalar_lea.vmem %s0, %s172
      %p174 = pneg %p36
      %p175 = pneg %p33
      %p176 = pneg %p57
      %p177 = pneg %p54
      %p178 = pneg %p78
      %p179 = pneg %p75
      %p180 = pneg %p99
      %p181 = pneg %p96
      %p182 = pneg %p125
      %p183 = pneg %p122
      %s184 = smul.u32 8, %s15
      %p185 = scmp.lt.s32.totalorder %s184, 15
      %s186 = scalar_select %p185, %s184, 15
      %s187 = smul.addr %s186, 4
      %s188 = scalar_lea.vmem %s4, %s187
      %s189 = smul.u32 8, %s15
      %p190 = scmp.lt.s32.totalorder %s189, 15
      %s191 = scalar_select %p190, %s189, 15
      %s192 = smul.addr %s191, 4
      %s193 = scalar_lea.vmem %s0, %s192
      %s194 = smul.u32 8, %s15
      %s195 = smul.u32 8, %s15
      %p196 = scmp.lt.s32.totalorder %s195, 15
      %s197 = scalar_select %p196, %s195, 15
      %s198 = smul.addr %s197, 4
      %s199 = scalar_lea.vmem %s4, %s198
      %s200 = smul.u32 8, %s15
      %v202 = vld [vmem:[%s193] sm:$0xf]
      %v203 = vld [vmem:[%s193 + $0x4] sm:$0xf]
      %v204 = vld [vmem:[%s193 + $0x8] sm:$0xf]
      %v205 = vld [vmem:[%s193 + $0xc] sm:$0xf]
      %v206 = vld [vmem:[%s193 + $0x10] sm:$0xf]
      %v207 = vld [vmem:[%s193 + $0x14] sm:$0xf]
      %v208 = vld [vmem:[%s193 + $0x18] sm:$0xf]
      %v209 = vld [vmem:[%s193 + $0x1c] sm:$0xf]
      %v210 = vld [vmem:[%s1] sm:$0xf]
      %v211 = vld [vmem:[%s1 + $0x4] sm:$0xf]
      %v212 = vld [vmem:[%s1 + $0x8] sm:$0xf]
      %v213 = vld [vmem:[%s1 + $0xc] sm:$0xf]
      %v214 = vld [vmem:[%s1 + $0x10] sm:$0xf]
      %v215 = vld [vmem:[%s1 + $0x14] sm:$0xf]
      %v216 = vld [vmem:[%s1 + $0x18] sm:$0xf]
      %v217 = vld [vmem:[%s1 + $0x1c] sm:$0xf]
      %v218 = vld [vmem:[%s1 + $0x20] sm:$0xf]
      %v219 = vld [vmem:[%s1 + $0x24] sm:$0xf]
      %v220 = vld [vmem:[%s1 + $0x28] sm:$0xf]
      %v221 = vld [vmem:[%s1 + $0x2c] sm:$0xf]
      %v222 = vld [vmem:[%s1 + $0x30] sm:$0xf]
      %v223 = vld [vmem:[%s1 + $0x34] sm:$0x3]
      %v232 = vunpack.c.l.b16 %v202
      %v233 = vunpack.c.l.b16 %v203
      %v234 = vunpack.c.l.b16 %v204
      %v235 = vunpack.c.l.b16 %v205
      %v236 = vunpack.c.l.b16 %v206
      %v237 = vunpack.c.l.b16 %v207
      %v238 = vunpack.c.l.b16 %v208
      %v239 = vunpack.c.l.b16 %v209
      %v240 = vpack.c.b16 %v233, %v232
      %v241 = vpack.c.b16 %v235, %v234
      %v242 = vpack.c.b16 %v237, %v236
      %v243 = vpack.c.b16 %v239, %v238
      %v258 = vunpack.c.l.b16 %v210
      %v259 = vunpack.c.l.b16 %v211
      %v260 = vunpack.c.l.b16 %v212
      %v261 = vunpack.c.l.b16 %v213
      %v262 = vunpack.c.l.b16 %v214
      %v263 = vunpack.c.l.b16 %v215
      %v264 = vunpack.c.l.b16 %v216
      %v265 = vunpack.c.l.b16 %v217
      %v266 = vunpack.c.l.b16 %v218
      %v267 = vunpack.c.l.b16 %v219
      %v268 = vunpack.c.l.b16 %v220
      %v269 = vunpack.c.l.b16 %v221
      %v270 = vunpack.c.l.b16 %v222
      %v271 = vunpack.c.l.b16 %v223
      %v272 = vpack.c.b16 %v259, %v258
      %v273 = vpack.c.b16 %v261, %v260
      %v274 = vpack.c.b16 %v263, %v262
      %v275 = vpack.c.b16 %v265, %v264
      %v276 = vpack.c.b16 %v267, %v266
      %v277 = vpack.c.b16 %v269, %v268
      %v278 = vpack.c.b16 %v271, %v270
      %vm285 = vcmask 883712
      %v287 = vsel %vm285, %v240, 0
      %v290 = vsel %vm285, %v241, 0
      %v293 = vsel %vm285, %v242, 0
      %v296 = vsel %vm285, %v243, 0
      %vm298 = vcmask 1045504
      %v300 = vsel %vm298, %v278, 0
      %302 = vmatprep.subr.bf16.mxu0 0
      %303 = vmatpush1.bf16.msra.mxu0 %v272
      %304 = vmatprep.subr.bf16.mxu0 0
      %305 = vmatpush1.bf16.msra.mxu0 %v273
      %306 = vmatprep.subr.bf16.mxu0 0
      %307 = vmatpush1.bf16.msra.mxu0 %v274
      %308 = vmatprep.subr.bf16.mxu0 0
      %309 = vmatpush1.bf16.msra.mxu0 %v275
      %310 = vmatprep.subr.bf16.mxu0 0
      %311 = vmatpush1.bf16.msra.mxu0 %v276
      %312 = vmatprep.subr.bf16.mxu0 0
      %313 = vmatpush1.bf16.msra.mxu0 %v277
      %314 = vmatprep.subr.bf16.mxu0 0
      %315 = vmatpush1.bf16.msra.mxu0 %v300
      %316 = vmatprep.subr.bf16.mxu0 0
      %317 = vmatpush1.bf16.msra.mxu0 0
      %318 = vmatprep.subr.bf16.mxu0 0
      %319 = vmatpush1.bf16.msra.mxu0 0
      %320 = vmatprep.subr.bf16.mxu0 0
      %321 = vmatpush1.bf16.msra.mxu0 0
      %322 = vmatprep.subr.bf16.mxu0 0
      %323 = vmatpush1.bf16.msra.mxu0 0
      %324 = vmatprep.subr.bf16.mxu0 0
      %325 = vmatpush1.bf16.msra.mxu0 0
      %326 = vmatprep.subr.bf16.mxu0 0
      %327 = vmatpush1.bf16.msra.mxu0 0
      %328 = vmatprep.subr.bf16.mxu0 0
      %329 = vmatpush1.bf16.msra.mxu0 0
      %330 = vmatprep.subr.bf16.mxu0 0
      %331 = vmatpush1.bf16.msra.mxu0 0
      %332 = vmatprep.subr.bf16.mxu0 0
      %333 = vmatpush1.bf16.msra.mxu0 0
      %334 = vmatprep.mubr.bf16.mxu0 0
      %335 = vmatmul.mubr.bf16.gmra.mrb[0].mxu0 %v287
      %v336 = vpop.f32.mrb[0].mxu0
      %v337 = vadd.f32 0.0, %v336
      %v338 = vpop.f32.mrb[0].mxu0
      %v339 = vpop.f32.mrb[0].mxu0
      %v340 = vadd.f32 0.0, %v339
      %v341 = vpop.f32.mrb[0].mxu0
      %342 = vmatprep.mubr.bf16.mxu0 0
      %343 = vmatmul.mubr.bf16.gmra.mrb[0].mxu0 %v290
      %v344 = vpop.f32.mrb[0].mxu0
      %v345 = vadd.f32 0.0, %v344
      %v346 = vpop.f32.mrb[0].mxu0
      %v347 = vpop.f32.mrb[0].mxu0
      %v348 = vadd.f32 0.0, %v347
      %v349 = vpop.f32.mrb[0].mxu0
      %350 = vmatprep.mubr.bf16.mxu0 0
      %351 = vmatmul.mubr.bf16.gmra.mrb[0].mxu0 %v293
      %v352 = vpop.f32.mrb[0].mxu0
      %v353 = vadd.f32 0.0, %v352
      %v354 = vpop.f32.mrb[0].mxu0
      %v355 = vpop.f32.mrb[0].mxu0
      %v356 = vadd.f32 0.0, %v355
      %v357 = vpop.f32.mrb[0].mxu0
      %358 = vmatprep.mubr.bf16.mxu0 0
      %359 = vmatmul.mubr.bf16.gmra.mrb[0].mxu0 %v296
      %v360 = vpop.f32.mrb[0].mxu0
      %v361 = vadd.f32 0.0, %v360
      %v362 = vpop.f32.mrb[0].mxu0
      %v363 = vpop.f32.mrb[0].mxu0
      %v364 = vadd.f32 0.0, %v363
      %v365 = vpop.f32.mrb[0].mxu0
      %366 = vdwg.mxu0
      %v367 = vld [vmem:[%s2] sm:$0x1]
      %v369 = vlaneseq
      %v370 = vshrl.u32 %v369, 7
      %v371 = vsub.s32 0, %v370
      %v372 = vrot.slane %v367, %v371
      %v374 = vmul.f32 %v337, %v372
      %v375 = vmul.f32 %v340, %v372
      %v376 = vmul.f32 %v345, %v372
      %v377 = vmul.f32 %v348, %v372
      %v378 = vmul.f32 %v353, %v372
      %v379 = vmul.f32 %v356, %v372
      %v380 = vmul.f32 %v361, %v372
      %v381 = vmul.f32 %v364, %v372
      %v382 = vld [vmem:[%s3] sm:$0x1]
      %v384 = vlaneseq
      %v385 = vshrl.u32 %v384, 7
      %v386 = vsub.s32 0, %v385
      %v387 = vrot.slane %v382, %v386
      %v389 = vadd.f32 %v374, %v387
      %v390 = vadd.f32 %v375, %v387
      %v391 = vadd.f32 %v376, %v387
      %v392 = vadd.f32 %v377, %v387
      %v393 = vadd.f32 %v378, %v387
      %v394 = vadd.f32 %v379, %v387
      %v395 = vadd.f32 %v380, %v387
      %v396 = vadd.f32 %v381, %v387
      %v397 = vmax.f32 %v389, 0.0
      %v398 = vmax.f32 %v390, 0.0
      %v399 = vmax.f32 %v391, 0.0
      %v400 = vmax.f32 %v392, 0.0
      %v401 = vmax.f32 %v393, 0.0
      %v402 = vmax.f32 %v394, 0.0
      %v403 = vmax.f32 %v395, 0.0
      %v404 = vmax.f32 %v396, 0.0
      %v405 = vpack.c.bf16 %v398, %v397
      %v406 = vpack.c.bf16 %v400, %v399
      %v407 = vpack.c.bf16 %v402, %v401
      %v408 = vpack.c.bf16 %v404, %v403
      %v413 = vunpack.c.l.b16 %v405
      %v414 = vunpack.c.h.b16 %v405
      %v415 = vunpack.c.l.b16 %v406
      %v416 = vunpack.c.h.b16 %v406
      %v417 = vunpack.c.l.b16 %v407
      %v418 = vunpack.c.h.b16 %v407
      %v419 = vunpack.c.l.b16 %v408
      %v420 = vunpack.c.h.b16 %v408
      %v421 = vpack.c.b16 %v413, %v413
      %v422 = vpack.c.b16 %v414, %v414
      %v423 = vpack.c.b16 %v415, %v415
      %v424 = vpack.c.b16 %v416, %v416
      %v425 = vpack.c.b16 %v417, %v417
      %v426 = vpack.c.b16 %v418, %v418
      %v427 = vpack.c.b16 %v419, %v419
      %v428 = vpack.c.b16 %v420, %v420
      %vm437 = vcmask 60416
      %438 = vst.msk [vmem:[%s199] sm:$0xf] %vm437, %v421
      %439 = vst.msk [vmem:[%s199 + $0x4] sm:$0xf] %vm437, %v422
      %440 = vst.msk [vmem:[%s199 + $0x8] sm:$0xf] %vm437, %v423
      %441 = vst.msk [vmem:[%s199 + $0xc] sm:$0xf] %vm437, %v424
      %442 = vst.msk [vmem:[%s199 + $0x10] sm:$0xf] %vm437, %v425
      %443 = vst.msk [vmem:[%s199 + $0x14] sm:$0xf] %vm437, %v426
      %444 = vst.msk [vmem:[%s199 + $0x18] sm:$0xf] %vm437, %v427
      %445 = vst.msk [vmem:[%s199 + $0x1c] sm:$0xf] %vm437, %v428
      %s446 = smul.u32 8, %s15
      %p447 = scmp.lt.s32.totalorder %s446, 15
      %s448 = scalar_select %p447, %s446, 15
      %s449 = smul.addr %s448, 4
      %s450 = scalar_lea.vmem %s4, %s449
      // Predicated region
      $region37: #{hourglass_forward.6} parent=35 // pred_check
        %p451 = pneg %p122
      $region38: #{hourglass_forward.6} parent=35 // pred_check_branch
        %453 = sbr.rel (%p451) target = $region40
      $region39: #{hourglass_forward.6} parent=35 // pred_region
        %s454 = smul.u32 8, %s15
      $region40: #{hourglass_forward.6} parent=35 // pred_fallthru
        _
    $region36: #{hourglass_forward.6} parent=5 // pred_fallthru
      _
    %p455 = scmp.le.s32.totalorder 2, %s10
    // Predicated region
    $region41: #{hourglass_forward.6} parent=5 // pred_check
      %p456 = pneg %p455
    $region42: #{hourglass_forward.6} parent=5 // pred_check_branch
      %458 = sbr.rel (%p456) target = $region44
    $region43: #{hourglass_forward.6} parent=5 // pred_region
      %s459 = ssub.s32 %s10, 2
      // Predicated region
      $region45: #{hourglass_forward.6} parent=43 // pred_check
        %p460 = pneg %p128
      $region46: #{hourglass_forward.6} parent=43 // pred_check_branch
        %462 = sbr.rel (%p460) target = $region48
      $region47: #{hourglass_forward.6} parent=43 // pred_region
        %s463 = smul.u32 8, %s16
        %p464 = scmp.lt.s32.totalorder %s463, 15
        %s465 = scalar_select %p464, %s463, 15
        %s466 = smul.addr %s465, 4
        %s467 = scalar_lea.vmem %s4, %s466
      $region48: #{hourglass_forward.6} parent=43 // pred_fallthru
        _
    $region44: #{hourglass_forward.6} parent=5 // pred_fallthru
      _
  $region6: #{hourglass_forward.6} parent=0 // loop_footer
    %s14 = sadd.s32 1, %s10
  $region7: #{hourglass_forward.6} parent=0 // loop_footer_branch
    %9 = sbr.rel target = $region3
  $region8: #{hourglass_forward.6} parent=0 // loop_exit
    _

// kernel: hourglass_forward.7
$region0: #{hourglass_forward.7}
  #allocation0 [shape = 'u32[]', space=smem, size = 0x4, offset = 0x4, fixed_abs, tag = 'smem constant byte address 0x4 - core index']
  #allocation1 [shape = 'u32[144,128]{1,0:T(1,128)}', space=vmem, size = 0x12000, scoped, tag = 'internal scratch']
  %s0 = inlined_call_operand.vmem [shape: bf16[128,216], index: 0, kind: input, shape index: {}]
  %s1 = inlined_call_operand.vmem [shape: bf16[216,8], index: 1, kind: input, shape index: {}]
  %s2 = inlined_call_operand.vmem [shape: f32[1,8], index: 2, kind: input, shape index: {}]
  %s3 = inlined_call_operand.vmem [shape: f32[1,8], index: 3, kind: input, shape index: {}]
  %s4 = inlined_call_operand.vmem [shape: f32[128,8], index: 4, kind: input, shape index: {}]
  %s5 = inlined_call_operand.vmem [shape: bf16[128,8], index: 5, kind: output, shape index: {}]
  %s6 = sld [smem:[#allocation0]]
  $region53: #{hourglass_forward.7} parent=0
    _
  %s8 = ssub.s32 1, %s6
  %s9 = scalar_select 0, %s8, %s6
  loop: start=0, step=1, limit=4
  $region2: #{hourglass_forward.7} parent=0 // loop_pre_header
    _
  $region3: #{hourglass_forward.7} parent=0 // loop_header
    %s11 = sphi 0, %s15
    %p12 = scmp.ge.s32.totalorder %s11, 4
    %s21 = sphi 0, %s23
    %s24 = sphi 0, %s21
    %s25 = sphi 0, %s24
    %s41 = sphi 0, %s25
    %s45 = sphi 0, %s45
    %s47 = sphi 0, %s45
    %s48 = sphi 0, %s47
    %s62 = sphi 0, %s48
    %s66 = sphi 0, %s66
    %s68 = sphi 0, %s66
    %s69 = sphi 0, %s68
    %s83 = sphi 0, %s69
    %s87 = sphi 0, %s87
    %s89 = sphi 0, %s87
    %s90 = sphi 0, %s89
    %s104 = sphi 0, %s90
    %s110 = sphi 0, %s112
    %s113 = sphi 0, %s110
    %s114 = sphi 0, %s113
    %s130 = sphi 0, %s114
    %s136 = sphi 0, %s138
    %s139 = sphi 0, %s136
    %s140 = sphi 0, %s139
    %s156 = sphi 0, %s140
  $region4: #{hourglass_forward.7} parent=0 // loop_header_branch
    %14 = sbr.rel (%p12) target = $region8
  $region5: #{hourglass_forward.7} parent=0 // loop_body
    %s16 = ssub.s32 %s11, 1
    %s17 = ssub.s32 %s11, 2
    %s18 = sadd.s32 %s11, 1
    %s19 = ssub.s32 %s11, %s18
    %p20 = scmp.eq.s32.totalorder %s19, 0
    %s22 = sadd.s32 %s21, 1
    %s23 = scalar_select %p20, %s21, %s22
    %p26 = pneg %p20
    %p27 = scmp.eq.s32.totalorder %s11, 1
    %p28 = por %p26, %p27
    %p29 = scmp.ne.s32.totalorder %s21, %s24
    %p30 = scmp.eq.s32.totalorder %s11, 0
    %p31 = por %p29, %p30
    %p32 = scmp.ne.s32.totalorder %s21, %s24
    %p33 = scmp.eq.s32.totalorder %s16, 1
    %p34 = por %p32, %p33
    %p35 = scmp.ne.s32.totalorder %s24, %s25
    %p36 = scmp.eq.s32.totalorder %s16, 0
    %p37 = por %p35, %p36
    %p38 = scmp.ne.s32.totalorder %s24, %s25
    %p39 = scmp.eq.s32.totalorder %s17, 1
    %p40 = por %p38, %p39
    %p42 = scmp.ne.s32.totalorder %s25, %s41
    %p43 = scmp.eq.s32.totalorder %s17, 0
    %p44 = por %p42, %p43
    %s46 = sadd.s32 %s45, 1
    %p49 = scmp.eq.s32.totalorder %s11, 1
    %p50 = scmp.ne.s32.totalorder %s45, %s47
    %p51 = scmp.eq.s32.totalorder %s11, 0
    %p52 = por %p50, %p51
    %p53 = scmp.ne.s32.totalorder %s45, %s47
    %p54 = scmp.eq.s32.totalorder %s16, 1
    %p55 = por %p53, %p54
    %p56 = scmp.ne.s32.totalorder %s47, %s48
    %p57 = scmp.eq.s32.totalorder %s16, 0
    %p58 = por %p56, %p57
    %p59 = scmp.ne.s32.totalorder %s47, %s48
    %p60 = scmp.eq.s32.totalorder %s17, 1
    %p61 = por %p59, %p60
    %p63 = scmp.ne.s32.totalorder %s48, %s62
    %p64 = scmp.eq.s32.totalorder %s17, 0
    %p65 = por %p63, %p64
    %s67 = sadd.s32 %s66, 1
    %p70 = scmp.eq.s32.totalorder %s11, 1
    %p71 = scmp.ne.s32.totalorder %s66, %s68
    %p72 = scmp.eq.s32.totalorder %s11, 0
    %p73 = por %p71, %p72
    %p74 = scmp.ne.s32.totalorder %s66, %s68
    %p75 = scmp.eq.s32.totalorder %s16, 1
    %p76 = por %p74, %p75
    %p77 = scmp.ne.s32.totalorder %s68, %s69
    %p78 = scmp.eq.s32.totalorder %s16, 0
    %p79 = por %p77, %p78
    %p80 = scmp.ne.s32.totalorder %s68, %s69
    %p81 = scmp.eq.s32.totalorder %s17, 1
    %p82 = por %p80, %p81
    %p84 = scmp.ne.s32.totalorder %s69, %s83
    %p85 = scmp.eq.s32.totalorder %s17, 0
    %p86 = por %p84, %p85
    %s88 = sadd.s32 %s87, 1
    %p91 = scmp.eq.s32.totalorder %s11, 1
    %p92 = scmp.ne.s32.totalorder %s87, %s89
    %p93 = scmp.eq.s32.totalorder %s11, 0
    %p94 = por %p92, %p93
    %p95 = scmp.ne.s32.totalorder %s87, %s89
    %p96 = scmp.eq.s32.totalorder %s16, 1
    %p97 = por %p95, %p96
    %p98 = scmp.ne.s32.totalorder %s89, %s90
    %p99 = scmp.eq.s32.totalorder %s16, 0
    %p100 = por %p98, %p99
    %p101 = scmp.ne.s32.totalorder %s89, %s90
    %p102 = scmp.eq.s32.totalorder %s17, 1
    %p103 = por %p101, %p102
    %p105 = scmp.ne.s32.totalorder %s90, %s104
    %p106 = scmp.eq.s32.totalorder %s17, 0
    %p107 = por %p105, %p106
    %s108 = ssub.s32 %s11, %s18
    %p109 = scmp.eq.s32.totalorder %s108, 0
    %s111 = sadd.s32 %s110, 1
    %s112 = scalar_select %p109, %s110, %s111
    %p115 = pneg %p109
    %p116 = scmp.eq.s32.totalorder %s11, 1
    %p117 = por %p115, %p116
    %p118 = scmp.ne.s32.totalorder %s110, %s113
    %p119 = scmp.eq.s32.totalorder %s11, 0
    %p120 = por %p118, %p119
    %p121 = scmp.ne.s32.totalorder %s110, %s113
    %p122 = scmp.eq.s32.totalorder %s16, 1
    %p123 = por %p121, %p122
    %p124 = scmp.ne.s32.totalorder %s113, %s114
    %p125 = scmp.eq.s32.totalorder %s16, 0
    %p126 = por %p124, %p125
    %p127 = scmp.ne.s32.totalorder %s113, %s114
    %p128 = scmp.eq.s32.totalorder %s17, 1
    %p129 = por %p127, %p128
    %p131 = scmp.ne.s32.totalorder %s114, %s130
    %p132 = scmp.eq.s32.totalorder %s17, 0
    %p133 = por %p131, %p132
    %s134 = ssub.s32 %s11, %s18
    %p135 = scmp.eq.s32.totalorder %s134, 0
    %s137 = sadd.s32 %s136, 1
    %s138 = scalar_select %p135, %s136, %s137
    %p141 = pneg %p135
    %p142 = scmp.eq.s32.totalorder %s11, 1
    %p143 = por %p141, %p142
    %p144 = scmp.ne.s32.totalorder %s136, %s139
    %p145 = scmp.eq.s32.totalorder %s11, 0
    %p146 = por %p144, %p145
    %p147 = scmp.ne.s32.totalorder %s136, %s139
    %p148 = scmp.eq.s32.totalorder %s16, 1
    %p149 = por %p147, %p148
    %p150 = scmp.ne.s32.totalorder %s139, %s140
    %p151 = scmp.eq.s32.totalorder %s16, 0
    %p152 = por %p150, %p151
    %p153 = scmp.ne.s32.totalorder %s139, %s140
    %p154 = scmp.eq.s32.totalorder %s17, 1
    %p155 = por %p153, %p154
    %p157 = scmp.ne.s32.totalorder %s140, %s156
    %p158 = scmp.eq.s32.totalorder %s17, 0
    %p159 = por %p157, %p158
    %p160 = scmp.le.s32.totalorder 1, %s11
    %p161 = scmp.lt.s32.totalorder %s11, 3
    %p162 = pnand %p160, %p161
    %p163 = pneg %p162
    // Predicated region
    $region9: #{hourglass_forward.7} parent=5 // pred_check
      _
    $region10: #{hourglass_forward.7} parent=5 // pred_check_branch
      %165 = sbr.rel (%p162) target = $region12
    $region11: #{hourglass_forward.7} parent=5 // pred_region
      %s166 = ssub.s32 %s11, 1
      // Predicated region
      $region13: #{hourglass_forward.7} parent=11 // pred_check
        %p167 = pneg %p58
      $region14: #{hourglass_forward.7} parent=11 // pred_check_branch
        %169 = sbr.rel (%p167) target = $region16
      $region15: #{hourglass_forward.7} parent=11 // pred_region
        _
      $region16: #{hourglass_forward.7} parent=11 // pred_fallthru
        _
      // Predicated region
      $region17: #{hourglass_forward.7} parent=11 // pred_check
        %p170 = pneg %p79
      $region18: #{hourglass_forward.7} parent=11 // pred_check_branch
        %172 = sbr.rel (%p170) target = $region20
      $region19: #{hourglass_forward.7} parent=11 // pred_region
        _
      $region20: #{hourglass_forward.7} parent=11 // pred_fallthru
        _
      // Predicated region
      $region21: #{hourglass_forward.7} parent=11 // pred_check
        %p173 = pneg %p100
      $region22: #{hourglass_forward.7} parent=11 // pred_check_branch
        %175 = sbr.rel (%p173) target = $region24
      $region23: #{hourglass_forward.7} parent=11 // pred_region
        _
      $region24: #{hourglass_forward.7} parent=11 // pred_fallthru
        _
    $region12: #{hourglass_forward.7} parent=5 // pred_fallthru
      _
    %p176 = scmp.lt.s32.totalorder %s11, 2
    // Predicated region
    $region25: #{hourglass_forward.7} parent=5 // pred_check
      %p177 = pneg %p176
    $region26: #{hourglass_forward.7} parent=5 // pred_check_branch
      %179 = sbr.rel (%p177) target = $region28
    $region27: #{hourglass_forward.7} parent=5 // pred_region
      // Predicated region
      $region29: #{hourglass_forward.7} parent=27 // pred_check
        %p180 = pneg %p31
      $region30: #{hourglass_forward.7} parent=27 // pred_check_branch
        %182 = sbr.rel (%p180) target = $region32
      $region31: #{hourglass_forward.7} parent=27 // pred_region
        %s183 = smul.u32 8, %s11
        %p184 = scmp.lt.s32.totalorder %s183, 15
        %s185 = scalar_select %p184, %s183, 15
        %s186 = smul.addr %s185, 2
        %s187 = smul.addr %s186, 4
        %s188 = scalar_lea.vmem %s0, %s187
        %s189 = smul.u32 8, %s11
      $region32: #{hourglass_forward.7} parent=27 // pred_fallthru
        _
      // Predicated region
      $region33: #{hourglass_forward.7} parent=27 // pred_check
        %p190 = pneg %p120
      $region34: #{hourglass_forward.7} parent=27 // pred_check_branch
        %192 = sbr.rel (%p190) target = $region36
      $region35: #{hourglass_forward.7} parent=27 // pred_region
        %s193 = smul.u32 8, %s11
        %p194 = scmp.lt.s32.totalorder %s193, 15
        %s195 = scalar_select %p194, %s193, 15
        %s196 = smul.addr %s195, 8
        %s197 = scalar_lea.vmem %s4, %s196
        %s198 = smul.u32 8, %s11
      $region36: #{hourglass_forward.7} parent=27 // pred_fallthru
        _
    $region28: #{hourglass_forward.7} parent=5 // pred_fallthru
      _
    %p199 = scmp.le.s32.totalorder 1, %s11
    %p200 = scmp.lt.s32.totalorder %s11, 3
    %p201 = pnand %p199, %p200
    %p202 = pneg %p201
    // Predicated region
    $region37: #{hourglass_forward.7} parent=5 // pred_check
      _
    $region38: #{hourglass_forward.7} parent=5 // pred_check_branch
      %204 = sbr.rel (%p201) target = $region40
    $region39: #{hourglass_forward.7} parent=5 // pred_region
      %s205 = ssub.s32 %s11, 1
      %s206 = smul.u32 8, %s16
      %p207 = scmp.lt.s32.totalorder %s206, 15
      %s208 = scalar_select %p207, %s206, 15
      %s209 = smul.addr %s208, 2
      %s210 = smul.addr %s209, 4
      %s211 = scalar_lea.vmem %s0, %s210
      %p212 = pneg %p37
      %p213 = pneg %p34
      %p214 = pneg %p58
      %p215 = pneg %p55
      %p216 = pneg %p79
      %p217 = pneg %p76
      %p218 = pneg %p100
      %p219 = pneg %p97
      %s220 = smul.u32 8, %s16
      %p221 = scmp.lt.s32.totalorder %s220, 15
      %s222 = scalar_select %p221, %s220, 15
      %s223 = smul.addr %s222, 8
      %s224 = scalar_lea.vmem %s4, %s223
      %p225 = pneg %p126
      %p226 = pneg %p123
      %p227 = pneg %p152
      %p228 = pneg %p149
      %s229 = smul.u32 8, %s16
      %p230 = scmp.lt.s32.totalorder %s229, 15
      %s231 = scalar_select %p230, %s229, 15
      %s232 = smul.addr %s231, 4
      %s233 = scalar_lea.vmem %s5, %s232
      %s234 = smul.u32 8, %s16
      %p235 = scmp.lt.s32.totalorder %s234, 15
      %s236 = scalar_select %p235, %s234, 15
      %s237 = smul.addr %s236, 2
      %s238 = smul.addr %s237, 4
      %s239 = scalar_lea.vmem %s0, %s238
      %s240 = smul.u32 8, %s16
      %s241 = smul.u32 8, %s16
      %p242 = scmp.lt.s32.totalorder %s241, 15
      %s243 = scalar_select %p242, %s241, 15
      %s244 = smul.addr %s243, 8
      %s245 = scalar_lea.vmem %s4, %s244
      %s246 = smul.u32 8, %s16
      %s247 = smul.u32 8, %s16
      %p248 = scmp.lt.s32.totalorder %s247, 15
      %s249 = scalar_select %p248, %s247, 15
      %s250 = smul.addr %s249, 4
      %s251 = scalar_lea.vmem %s5, %s250
      %s252 = smul.u32 8, %s16
      %v254 = vld [vmem:[%s239] sm:$0xff]
      %v255 = vld [vmem:[%s239 + $0x8] sm:$0xff]
      %v256 = vld [vmem:[%s239 + $0x10] sm:$0xff]
      %v257 = vld [vmem:[%s239 + $0x18] sm:$0xff]
      %v258 = vld [vmem:[%s239 + $0x20] sm:$0xff]
      %v259 = vld [vmem:[%s239 + $0x28] sm:$0xff]
      %v260 = vld [vmem:[%s239 + $0x30] sm:$0xff]
      %v261 = vld [vmem:[%s239 + $0x38] sm:$0xff]
      %v262 = vld [vmem:[%s1] sm:$0xf]
      %v263 = vld [vmem:[%s1 + $0x4] sm:$0xf]
      %v264 = vld [vmem:[%s1 + $0x8] sm:$0xf]
      %v265 = vld [vmem:[%s1 + $0xc] sm:$0xf]
      %v266 = vld [vmem:[%s1 + $0x10] sm:$0xf]
      %v267 = vld [vmem:[%s1 + $0x14] sm:$0xf]
      %v268 = vld [vmem:[%s1 + $0x18] sm:$0xf]
      %v269 = vld [vmem:[%s1 + $0x1c] sm:$0xf]
      %v270 = vld [vmem:[%s1 + $0x20] sm:$0xf]
      %v271 = vld [vmem:[%s1 + $0x24] sm:$0xf]
      %v272 = vld [vmem:[%s1 + $0x28] sm:$0xf]
      %v273 = vld [vmem:[%s1 + $0x2c] sm:$0xf]
      %v274 = vld [vmem:[%s1 + $0x30] sm:$0xf]
      %v275 = vld [vmem:[%s1 + $0x34] sm:$0xf]
      %v276 = vld [vmem:[%s1 + $0x38] sm:$0xf]
      %v277 = vld [vmem:[%s1 + $0x3c] sm:$0xf]
      %v278 = vld [vmem:[%s1 + $0x40] sm:$0xf]
      %v279 = vld [vmem:[%s1 + $0x44] sm:$0xf]
      %v280 = vld [vmem:[%s1 + $0x48] sm:$0xf]
      %v281 = vld [vmem:[%s1 + $0x4c] sm:$0xf]
      %v282 = vld [vmem:[%s1 + $0x50] sm:$0xf]
      %v283 = vld [vmem:[%s1 + $0x54] sm:$0xf]
      %v284 = vld [vmem:[%s1 + $0x58] sm:$0xf]
      %v285 = vld [vmem:[%s1 + $0x5c] sm:$0xf]
      %v286 = vld [vmem:[%s1 + $0x60] sm:$0xf]
      %v287 = vld [vmem:[%s1 + $0x64] sm:$0xf]
      %v288 = vld [vmem:[%s1 + $0x68] sm:$0xf]
      %v297 = vunpack.c.l.b16 %v254
      %v298 = vunpack.c.h.b16 %v254
      %v299 = vunpack.c.l.b16 %v255
      %v300 = vunpack.c.h.b16 %v255
      %v301 = vunpack.c.l.b16 %v256
      %v302 = vunpack.c.h.b16 %v256
      %v303 = vunpack.c.l.b16 %v257
      %v304 = vunpack.c.h.b16 %v257
      %v305 = vunpack.c.l.b16 %v258
      %v306 = vunpack.c.h.b16 %v258
      %v307 = vunpack.c.l.b16 %v259
      %v308 = vunpack.c.h.b16 %v259
      %v309 = vunpack.c.l.b16 %v260
      %v310 = vunpack.c.h.b16 %v260
      %v311 = vunpack.c.l.b16 %v261
      %v312 = vunpack.c.h.b16 %v261
      %v313 = vpack.c.b16 %v299, %v297
      %v314 = vpack.c.b16 %v300, %v298
      %v315 = vpack.c.b16 %v303, %v301
      %v316 = vpack.c.b16 %v304, %v302
      %v317 = vpack.c.b16 %v307, %v305
      %v318 = vpack.c.b16 %v308, %v306
      %v319 = vpack.c.b16 %v311, %v309
      %v320 = vpack.c.b16 %v312, %v310
      %v352 = vunpack.c.l.b16 %v262
      %v353 = vunpack.c.l.b16 %v263
      %v354 = vunpack.c.l.b16 %v264
      %v355 = vunpack.c.l.b16 %v265
      %v356 = vunpack.c.l.b16 %v266
      %v357 = vunpack.c.l.b16 %v267
      %v358 = vunpack.c.l.b16 %v268
      %v359 = vunpack.c.l.b16 %v269
      %v360 = vunpack.c.l.b16 %v270
      %v361 = vunpack.c.l.b16 %v271
      %v362 = vunpack.c.l.b16 %v272
      %v363 = vunpack.c.l.b16 %v273
      %v364 = vunpack.c.l.b16 %v274
      %v365 = vunpack.c.l.b16 %v275
      %v366 = vunpack.c.l.b16 %v276
      %v367 = vunpack.c.l.b16 %v277
      %v368 = vunpack.c.l.b16 %v278
      %v369 = vunpack.c.l.b16 %v279
      %v370 = vunpack.c.l.b16 %v280
      %v371 = vunpack.c.l.b16 %v281
      %v372 = vunpack.c.l.b16 %v282
      %v373 = vunpack.c.l.b16 %v283
      %v374 = vunpack.c.l.b16 %v284
      %v375 = vunpack.c.l.b16 %v285
      %v376 = vunpack.c.l.b16 %v286
      %v377 = vunpack.c.l.b16 %v287
      %v378 = vunpack.c.l.b16 %v288
      %v379 = vpack.c.b16 %v353, %v352
      %v380 = vpack.c.b16 %v355, %v354
      %v381 = vpack.c.b16 %v357, %v356
      %v382 = vpack.c.b16 %v359, %v358
      %v383 = vpack.c.b16 %v361, %v360
      %v384 = vpack.c.b16 %v363, %v362
      %v385 = vpack.c.b16 %v365, %v364
      %v386 = vpack.c.b16 %v367, %v366
      %v387 = vpack.c.b16 %v369, %v368
      %v388 = vpack.c.b16 %v371, %v370
      %v389 = vpack.c.b16 %v373, %v372
      %v390 = vpack.c.b16 %v375, %v374
      %v391 = vpack.c.b16 %v377, %v376
      %v392 = vpack.c.b16 %v378, %v378
      %vm406 = vcmask 719872
      %v408 = vsel %vm406, %v314, 0
      %v411 = vsel %vm406, %v316, 0
      %v414 = vsel %vm406, %v318, 0
      %v417 = vsel %vm406, %v320, 0
      %vm419 = vcmask 1043456
      %v421 = vsel %vm419, %v392, 0
      %423 = vmatprep.subr.bf16.mxu0 0
      %424 = vmatpush1.bf16.msra.mxu0 %v379
      %425 = vmatprep.subr.bf16.mxu0 0
      %426 = vmatpush1.bf16.msra.mxu0 %v380
      %427 = vmatprep.subr.bf16.mxu0 0
      %428 = vmatpush1.bf16.msra.mxu0 %v381
      %429 = vmatprep.subr.bf16.mxu0 0
      %430 = vmatpush1.bf16.msra.mxu0 %v382
      %431 = vmatprep.subr.bf16.mxu0 0
      %432 = vmatpush1.bf16.msra.mxu0 %v383
      %433 = vmatprep.subr.bf16.mxu0 0
      %434 = vmatpush1.bf16.msra.mxu0 %v384
      %435 = vmatprep.subr.bf16.mxu0 0
      %436 = vmatpush1.bf16.msra.mxu0 %v385
      %437 = vmatprep.subr.bf16.mxu0 0
      %438 = vmatpush1.bf16.msra.mxu0 %v386
      %439 = vmatprep.subr.bf16.mxu0 0
      %440 = vmatpush1.bf16.msra.mxu0 %v387
      %441 = vmatprep.subr.bf16.mxu0 0
      %442 = vmatpush1.bf16.msra.mxu0 %v388
      %443 = vmatprep.subr.bf16.mxu0 0
      %444 = vmatpush1.bf16.msra.mxu0 %v389
      %445 = vmatprep.subr.bf16.mxu0 0
      %446 = vmatpush1.bf16.msra.mxu0 %v390
      %447 = vmatprep.subr.bf16.mxu0 0
      %448 = vmatpush1.bf16.msra.mxu0 %v391
      %449 = vmatprep.subr.bf16.mxu0 0
      %450 = vmatpush1.bf16.msra.mxu0 %v421
      %451 = vmatprep.subr.bf16.mxu0 0
      %452 = vmatpush1.bf16.msra.mxu0 0
      %453 = vmatprep.subr.bf16.mxu0 0
      %454 = vmatpush1.bf16.msra.mxu0 0
      %455 = vmatprep.mubr.bf16.mxu0 %v408
      %456 = vmatmul.mubr.bf16.gmra.mrb[0].mxu0 %v313
      %v457 = vpop.f32.mrb[0].mxu0
      %v458 = vadd.f32 0.0, %v457
      %v459 = vpop.f32.mrb[0].mxu0
      %v460 = vpop.f32.mrb[0].mxu0
      %v461 = vadd.f32 0.0, %v460
      %v462 = vpop.f32.mrb[0].mxu0
      %463 = vmatprep.mubr.bf16.mxu0 %v411
      %464 = vmatmul.mubr.bf16.gmra.mrb[0].mxu0 %v315
      %v465 = vpop.f32.mrb[0].mxu0
      %v466 = vadd.f32 0.0, %v465
      %v467 = vpop.f32.mrb[0].mxu0
      %v468 = vpop.f32.mrb[0].mxu0
      %v469 = vadd.f32 0.0, %v468
      %v470 = vpop.f32.mrb[0].mxu0
      %471 = vmatprep.mubr.bf16.mxu0 %v414
      %472 = vmatmul.mubr.bf16.gmra.mrb[0].mxu0 %v317
      %v473 = vpop.f32.mrb[0].mxu0
      %v474 = vadd.f32 0.0, %v473
      %v475 = vpop.f32.mrb[0].mxu0
      %v476 = vpop.f32.mrb[0].mxu0
      %v477 = vadd.f32 0.0, %v476
      %v478 = vpop.f32.mrb[0].mxu0
      %479 = vmatprep.mubr.bf16.mxu0 %v417
      %480 = vmatmul.mubr.bf16.gmra.mrb[0].mxu0 %v319
      %v481 = vpop.f32.mrb[0].mxu0
      %v482 = vadd.f32 0.0, %v481
      %v483 = vpop.f32.mrb[0].mxu0
      %v484 = vpop.f32.mrb[0].mxu0
      %v485 = vadd.f32 0.0, %v484
      %v486 = vpop.f32.mrb[0].mxu0
      %487 = vdwg.mxu0
      %v488 = vld [vmem:[%s2] sm:$0x1]
      %v490 = vlaneseq
      %v491 = vshrl.u32 %v490, 7
      %v492 = vsub.s32 0, %v491
      %v493 = vrot.slane %v488, %v492
      %v495 = vmul.f32 %v458, %v493
      %v496 = vmul.f32 %v461, %v493
      %v497 = vmul.f32 %v466, %v493
      %v498 = vmul.f32 %v469, %v493
      %v499 = vmul.f32 %v474, %v493
      %v500 = vmul.f32 %v477, %v493
      %v501 = vmul.f32 %v482, %v493
      %v502 = vmul.f32 %v485, %v493
      %v503 = vld [vmem:[%s3] sm:$0x1]
      %v505 = vlaneseq
      %v506 = vshrl.u32 %v505, 7
      %v507 = vsub.s32 0, %v506
      %v508 = vrot.slane %v503, %v507
      %v510 = vadd.f32 %v495, %v508
      %v511 = vadd.f32 %v496, %v508
      %v512 = vadd.f32 %v497, %v508
      %v513 = vadd.f32 %v498, %v508
      %v514 = vadd.f32 %v499, %v508
      %v515 = vadd.f32 %v500, %v508
      %v516 = vadd.f32 %v501, %v508
      %v517 = vadd.f32 %v502, %v508
      %v518 = vld [vmem:[%s245] sm:$0xff]
      %v519 = vld [vmem:[%s245 + $0x8] sm:$0xff]
      %v520 = vld [vmem:[%s245 + $0x10] sm:$0xff]
      %v521 = vld [vmem:[%s245 + $0x18] sm:$0xff]
      %v522 = vld [vmem:[%s245 + $0x20] sm:$0xff]
      %v523 = vld [vmem:[%s245 + $0x28] sm:$0xff]
      %v524 = vld [vmem:[%s245 + $0x30] sm:$0xff]
      %v525 = vld [vmem:[%s245 + $0x38] sm:$0xff]
      %v526 = vadd.f32 %v510, %v518
      %v527 = vadd.f32 %v511, %v519
      %v528 = vadd.f32 %v512, %v520
      %v529 = vadd.f32 %v513, %v521
      %v530 = vadd.f32 %v514, %v522
      %v531 = vadd.f32 %v515, %v523
      %v532 = vadd.f32 %v516, %v524
      %v533 = vadd.f32 %v517, %v525
      %v534 = vmax.f32 %v526, 0.0
      %v535 = vmax.f32 %v527, 0.0
      %v536 = vmax.f32 %v528, 0.0
      %v537 = vmax.f32 %v529, 0.0
      %v538 = vmax.f32 %v530, 0.0
      %v539 = vmax.f32 %v531, 0.0
      %v540 = vmax.f32 %v532, 0.0
      %v541 = vmax.f32 %v533, 0.0
      %v542 = vpack.c.bf16 %v535, %v534
      %v543 = vpack.c.bf16 %v537, %v536
      %v544 = vpack.c.bf16 %v539, %v538
      %v545 = vpack.c.bf16 %v541, %v540
      %v550 = vunpack.c.l.b16 %v542
      %v551 = vunpack.c.h.b16 %v542
      %v552 = vunpack.c.l.b16 %v543
      %v553 = vunpack.c.h.b16 %v543
      %v554 = vunpack.c.l.b16 %v544
      %v555 = vunpack.c.h.b16 %v544
      %v556 = vunpack.c.l.b16 %v545
      %v557 = vunpack.c.h.b16 %v545
      %v558 = vpack.c.b16 %v550, %v550
      %v559 = vpack.c.b16 %v551, %v551
      %v560 = vpack.c.b16 %v552, %v552
      %v561 = vpack.c.b16 %v553, %v553
      %v562 = vpack.c.b16 %v554, %v554
      %v563 = vpack.c.b16 %v555, %v555
      %v564 = vpack.c.b16 %v556, %v556
      %v565 = vpack.c.b16 %v557, %v557
      %vm574 = vcmask 60416
      %575 = vst.msk [vmem:[%s251] sm:$0xf] %vm574, %v558
      %576 = vst.msk [vmem:[%s251 + $0x4] sm:$0xf] %vm574, %v559
      %577 = vst.msk [vmem:[%s251 + $0x8] sm:$0xf] %vm574, %v560
      %578 = vst.msk [vmem:[%s251 + $0xc] sm:$0xf] %vm574, %v561
      %579 = vst.msk [vmem:[%s251 + $0x10] sm:$0xf] %vm574, %v562
      %580 = vst.msk [vmem:[%s251 + $0x14] sm:$0xf] %vm574, %v563
      %581 = vst.msk [vmem:[%s251 + $0x18] sm:$0xf] %vm574, %v564
      %582 = vst.msk [vmem:[%s251 + $0x1c] sm:$0xf] %vm574, %v565
      %s583 = smul.u32 8, %s16
      %p584 = scmp.lt.s32.totalorder %s583, 15
      %s585 = scalar_select %p584, %s583, 15
      %s586 = smul.addr %s585, 4
      %s587 = scalar_lea.vmem %s5, %s586
      // Predicated region
      $region41: #{hourglass_forward.7} parent=39 // pred_check
        %p588 = pneg %p149
      $region42: #{hourglass_forward.7} parent=39 // pred_check_branch
        %590 = sbr.rel (%p588) target = $region44
      $region43: #{hourglass_forward.7} parent=39 // pred_region
        %s591 = smul.u32 8, %s16
      $region44: #{hourglass_forward.7} parent=39 // pred_fallthru
        _
    $region40: #{hourglass_forward.7} parent=5 // pred_fallthru
      _
    %p592 = scmp.le.s32.totalorder 2, %s11
    // Predicated region
    $region45: #{hourglass_forward.7} parent=5 // pred_check
      %p593 = pneg %p592
    $region46: #{hourglass_forward.7} parent=5 // pred_check_branch
      %595 = sbr.rel (%p593) target = $region48
    $region47: #{hourglass_forward.7} parent=5 // pred_region
      %s596 = ssub.s32 %s11, 2
      // Predicated region
      $region49: #{hourglass_forward.7} parent=47 // pred_check
        %p597 = pneg %p155
      $region50: #{hourglass_forward.7} parent=47 // pred_check_branch
        %599 = sbr.rel (%p597) target = $region52
      $region51: #{hourglass_forward.7} parent=47 // pred_region
        %s600 = smul.u32 8, %s17
        %p601 = scmp.lt.s32.totalorder %s600, 15
        %s602 = scalar_select %p601, %s600, 15
        %s603 = smul.addr %s602, 4
        %s604 = scalar_lea.vmem %s5, %s603
      $region52: #{hourglass_forward.7} parent=47 // pred_fallthru
        _
    $region48: #{hourglass_forward.7} parent=5 // pred_fallthru
      _
  $region6: #{hourglass_forward.7} parent=0 // loop_footer
    %s15 = sadd.s32 1, %s11
  $region7: #{hourglass_forward.7} parent=0 // loop_footer_branch
    %10 = sbr.rel target = $region3
  $region8: #{hourglass_forward.7} parent=0 // loop_exit
    _

// kernel: hourglass_forward.8
$region0: #{hourglass_forward.8}
  #allocation0 [shape = 'u32[]', space=smem, size = 0x4, offset = 0x4, fixed_abs, tag = 'smem constant byte address 0x4 - core index']
  #allocation1 [shape = 'u32[144,128]{1,0:T(1,128)}', space=vmem, size = 0x12000, scoped, tag = 'internal scratch']
  %s0 = inlined_call_operand.vmem [shape: bf16[16,216], index: 0, kind: input, shape index: {}]
  %s1 = inlined_call_operand.vmem [shape: bf16[216,8], index: 1, kind: input, shape index: {}]
  %s2 = inlined_call_operand.vmem [shape: f32[1,8], index: 2, kind: input, shape index: {}]
  %s3 = inlined_call_operand.vmem [shape: f32[1,8], index: 3, kind: input, shape index: {}]
  %s4 = inlined_call_operand.vmem [shape: bf16[16,8], index: 4, kind: output, shape index: {}]
  %s5 = sld [smem:[#allocation0]]
  $region49: #{hourglass_forward.8} parent=0
    _
  %s7 = ssub.s32 1, %s5
  %s8 = scalar_select 0, %s7, %s5
  loop: start=0, step=1, limit=4
  $region2: #{hourglass_forward.8} parent=0 // loop_pre_header
    _
  $region3: #{hourglass_forward.8} parent=0 // loop_header
    %s10 = sphi 0, %s14
    %p11 = scmp.ge.s32.totalorder %s10, 4
    %s20 = sphi 0, %s22
    %s23 = sphi 0, %s20
    %s24 = sphi 0, %s23
    %s40 = sphi 0, %s24
    %s44 = sphi 0, %s44
    %s46 = sphi 0, %s44
    %s47 = sphi 0, %s46
    %s61 = sphi 0, %s47
    %s65 = sphi 0, %s65
    %s67 = sphi 0, %s65
    %s68 = sphi 0, %s67
    %s82 = sphi 0, %s68
    %s86 = sphi 0, %s86
    %s88 = sphi 0, %s86
    %s89 = sphi 0, %s88
    %s103 = sphi 0, %s89
    %s109 = sphi 0, %s111
    %s112 = sphi 0, %s109
    %s113 = sphi 0, %s112
    %s129 = sphi 0, %s113
  $region4: #{hourglass_forward.8} parent=0 // loop_header_branch
    %13 = sbr.rel (%p11) target = $region8
  $region5: #{hourglass_forward.8} parent=0 // loop_body
    %s15 = ssub.s32 %s10, 1
    %s16 = ssub.s32 %s10, 2
    %s17 = sadd.s32 %s10, 1
    %s18 = ssub.s32 %s10, %s17
    %p19 = scmp.eq.s32.totalorder %s18, 0
    %s21 = sadd.s32 %s20, 1
    %s22 = scalar_select %p19, %s20, %s21
    %p25 = pneg %p19
    %p26 = scmp.eq.s32.totalorder %s10, 1
    %p27 = por %p25, %p26
    %p28 = scmp.ne.s32.totalorder %s20, %s23
    %p29 = scmp.eq.s32.totalorder %s10, 0
    %p30 = por %p28, %p29
    %p31 = scmp.ne.s32.totalorder %s20, %s23
    %p32 = scmp.eq.s32.totalorder %s15, 1
    %p33 = por %p31, %p32
    %p34 = scmp.ne.s32.totalorder %s23, %s24
    %p35 = scmp.eq.s32.totalorder %s15, 0
    %p36 = por %p34, %p35
    %p37 = scmp.ne.s32.totalorder %s23, %s24
    %p38 = scmp.eq.s32.totalorder %s16, 1
    %p39 = por %p37, %p38
    %p41 = scmp.ne.s32.totalorder %s24, %s40
    %p42 = scmp.eq.s32.totalorder %s16, 0
    %p43 = por %p41, %p42
    %s45 = sadd.s32 %s44, 1
    %p48 = scmp.eq.s32.totalorder %s10, 1
    %p49 = scmp.ne.s32.totalorder %s44, %s46
    %p50 = scmp.eq.s32.totalorder %s10, 0
    %p51 = por %p49, %p50
    %p52 = scmp.ne.s32.totalorder %s44, %s46
    %p53 = scmp.eq.s32.totalorder %s15, 1
    %p54 = por %p52, %p53
    %p55 = scmp.ne.s32.totalorder %s46, %s47
    %p56 = scmp.eq.s32.totalorder %s15, 0
    %p57 = por %p55, %p56
    %p58 = scmp.ne.s32.totalorder %s46, %s47
    %p59 = scmp.eq.s32.totalorder %s16, 1
    %p60 = por %p58, %p59
    %p62 = scmp.ne.s32.totalorder %s47, %s61
    %p63 = scmp.eq.s32.totalorder %s16, 0
    %p64 = por %p62, %p63
    %s66 = sadd.s32 %s65, 1
    %p69 = scmp.eq.s32.totalorder %s10, 1
    %p70 = scmp.ne.s32.totalorder %s65, %s67
    %p71 = scmp.eq.s32.totalorder %s10, 0
    %p72 = por %p70, %p71
    %p73 = scmp.ne.s32.totalorder %s65, %s67
    %p74 = scmp.eq.s32.totalorder %s15, 1
    %p75 = por %p73, %p74
    %p76 = scmp.ne.s32.totalorder %s67, %s68
    %p77 = scmp.eq.s32.totalorder %s15, 0
    %p78 = por %p76, %p77
    %p79 = scmp.ne.s32.totalorder %s67, %s68
    %p80 = scmp.eq.s32.totalorder %s16, 1
    %p81 = por %p79, %p80
    %p83 = scmp.ne.s32.totalorder %s68, %s82
    %p84 = scmp.eq.s32.totalorder %s16, 0
    %p85 = por %p83, %p84
    %s87 = sadd.s32 %s86, 1
    %p90 = scmp.eq.s32.totalorder %s10, 1
    %p91 = scmp.ne.s32.totalorder %s86, %s88
    %p92 = scmp.eq.s32.totalorder %s10, 0
    %p93 = por %p91, %p92
    %p94 = scmp.ne.s32.totalorder %s86, %s88
    %p95 = scmp.eq.s32.totalorder %s15, 1
    %p96 = por %p94, %p95
    %p97 = scmp.ne.s32.totalorder %s88, %s89
    %p98 = scmp.eq.s32.totalorder %s15, 0
    %p99 = por %p97, %p98
    %p100 = scmp.ne.s32.totalorder %s88, %s89
    %p101 = scmp.eq.s32.totalorder %s16, 1
    %p102 = por %p100, %p101
    %p104 = scmp.ne.s32.totalorder %s89, %s103
    %p105 = scmp.eq.s32.totalorder %s16, 0
    %p106 = por %p104, %p105
    %s107 = ssub.s32 %s10, %s17
    %p108 = scmp.eq.s32.totalorder %s107, 0
    %s110 = sadd.s32 %s109, 1
    %s111 = scalar_select %p108, %s109, %s110
    %p114 = pneg %p108
    %p115 = scmp.eq.s32.totalorder %s10, 1
    %p116 = por %p114, %p115
    %p117 = scmp.ne.s32.totalorder %s109, %s112
    %p118 = scmp.eq.s32.totalorder %s10, 0
    %p119 = por %p117, %p118
    %p120 = scmp.ne.s32.totalorder %s109, %s112
    %p121 = scmp.eq.s32.totalorder %s15, 1
    %p122 = por %p120, %p121
    %p123 = scmp.ne.s32.totalorder %s112, %s113
    %p124 = scmp.eq.s32.totalorder %s15, 0
    %p125 = por %p123, %p124
    %p126 = scmp.ne.s32.totalorder %s112, %s113
    %p127 = scmp.eq.s32.totalorder %s16, 1
    %p128 = por %p126, %p127
    %p130 = scmp.ne.s32.totalorder %s113, %s129
    %p131 = scmp.eq.s32.totalorder %s16, 0
    %p132 = por %p130, %p131
    %p133 = scmp.le.s32.totalorder 1, %s10
    %p134 = scmp.lt.s32.totalorder %s10, 3
    %p135 = pnand %p133, %p134
    %p136 = pneg %p135
    // Predicated region
    $region9: #{hourglass_forward.8} parent=5 // pred_check
      _
    $region10: #{hourglass_forward.8} parent=5 // pred_check_branch
      %138 = sbr.rel (%p135) target = $region12
    $region11: #{hourglass_forward.8} parent=5 // pred_region
      %s139 = ssub.s32 %s10, 1
      // Predicated region
      $region13: #{hourglass_forward.8} parent=11 // pred_check
        %p140 = pneg %p57
      $region14: #{hourglass_forward.8} parent=11 // pred_check_branch
        %142 = sbr.rel (%p140) target = $region16
      $region15: #{hourglass_forward.8} parent=11 // pred_region
        _
      $region16: #{hourglass_forward.8} parent=11 // pred_fallthru
        _
      // Predicated region
      $region17: #{hourglass_forward.8} parent=11 // pred_check
        %p143 = pneg %p78
      $region18: #{hourglass_forward.8} parent=11 // pred_check_branch
        %145 = sbr.rel (%p143) target = $region20
      $region19: #{hourglass_forward.8} parent=11 // pred_region
        _
      $region20: #{hourglass_forward.8} parent=11 // pred_fallthru
        _
      // Predicated region
      $region21: #{hourglass_forward.8} parent=11 // pred_check
        %p146 = pneg %p99
      $region22: #{hourglass_forward.8} parent=11 // pred_check_branch
        %148 = sbr.rel (%p146) target = $region24
      $region23: #{hourglass_forward.8} parent=11 // pred_region
        _
      $region24: #{hourglass_forward.8} parent=11 // pred_fallthru
        _
    $region12: #{hourglass_forward.8} parent=5 // pred_fallthru
      _
    %p149 = scmp.lt.s32.totalorder %s10, 2
    // Predicated region
    $region25: #{hourglass_forward.8} parent=5 // pred_check
      %p150 = pneg %p149
    $region26: #{hourglass_forward.8} parent=5 // pred_check_branch
      %152 = sbr.rel (%p150) target = $region28
    $region27: #{hourglass_forward.8} parent=5 // pred_region
      // Predicated region
      $region29: #{hourglass_forward.8} parent=27 // pred_check
        %p153 = pneg %p30
      $region30: #{hourglass_forward.8} parent=27 // pred_check_branch
        %155 = sbr.rel (%p153) target = $region32
      $region31: #{hourglass_forward.8} parent=27 // pred_region
        %p156 = scmp.lt.s32.totalorder %s10, 1
        %s157 = scalar_select %p156, %s10, 1
        %s158 = smul.addr %s157, 2
        %s159 = smul.addr %s158, 4
        %s160 = scalar_lea.vmem %s0, %s159
      $region32: #{hourglass_forward.8} parent=27 // pred_fallthru
        _
    $region28: #{hourglass_forward.8} parent=5 // pred_fallthru
      _
    %p161 = scmp.le.s32.totalorder 1, %s10
    %p162 = scmp.lt.s32.totalorder %s10, 3
    %p163 = pnand %p161, %p162
    %p164 = pneg %p163
    // Predicated region
    $region33: #{hourglass_forward.8} parent=5 // pred_check
      _
    $region34: #{hourglass_forward.8} parent=5 // pred_check_branch
      %166 = sbr.rel (%p163) target = $region36
    $region35: #{hourglass_forward.8} parent=5 // pred_region
      %s167 = ssub.s32 %s10, 1
      %p168 = scmp.lt.s32.totalorder %s15, 1
      %s169 = scalar_select %p168, %s15, 1
      %s170 = smul.addr %s169, 2
      %s171 = smul.addr %s170, 4
      %s172 = scalar_lea.vmem %s0, %s171
      %p173 = pneg %p36
      %p174 = pneg %p33
      %p175 = pneg %p57
      %p176 = pneg %p54
      %p177 = pneg %p78
      %p178 = pneg %p75
      %p179 = pneg %p99
      %p180 = pneg %p96
      %p181 = pneg %p125
      %p182 = pneg %p122
      %p183 = scmp.lt.s32.totalorder %s15, 1
      %s184 = scalar_select %p183, %s15, 1
      %s185 = smul.addr %s184, 4
      %s186 = scalar_lea.vmem %s4, %s185
      %p187 = scmp.lt.s32.totalorder %s15, 1
      %s188 = scalar_select %p187, %s15, 1
      %s189 = smul.addr %s188, 2
      %s190 = smul.addr %s189, 4
      %s191 = scalar_lea.vmem %s0, %s190
      %p192 = scmp.lt.s32.totalorder %s15, 1
      %s193 = scalar_select %p192, %s15, 1
      %s194 = smul.addr %s193, 4
      %s195 = scalar_lea.vmem %s4, %s194
      %v197 = vld [vmem:[%s191] sm:$0xff]
      %v198 = vld [vmem:[%s1] sm:$0xf]
      %v199 = vld [vmem:[%s1 + $0x4] sm:$0xf]
      %v200 = vld [vmem:[%s1 + $0x8] sm:$0xf]
      %v201 = vld [vmem:[%s1 + $0xc] sm:$0xf]
      %v202 = vld [vmem:[%s1 + $0x10] sm:$0xf]
      %v203 = vld [vmem:[%s1 + $0x14] sm:$0xf]
      %v204 = vld [vmem:[%s1 + $0x18] sm:$0xf]
      %v205 = vld [vmem:[%s1 + $0x1c] sm:$0xf]
      %v206 = vld [vmem:[%s1 + $0x20] sm:$0xf]
      %v207 = vld [vmem:[%s1 + $0x24] sm:$0xf]
      %v208 = vld [vmem:[%s1 + $0x28] sm:$0xf]
      %v209 = vld [vmem:[%s1 + $0x2c] sm:$0xf]
      %v210 = vld [vmem:[%s1 + $0x30] sm:$0xf]
      %v211 = vld [vmem:[%s1 + $0x34] sm:$0xf]
      %v212 = vld [vmem:[%s1 + $0x38] sm:$0xf]
      %v213 = vld [vmem:[%s1 + $0x3c] sm:$0xf]
      %v214 = vld [vmem:[%s1 + $0x40] sm:$0xf]
      %v215 = vld [vmem:[%s1 + $0x44] sm:$0xf]
      %v216 = vld [vmem:[%s1 + $0x48] sm:$0xf]
      %v217 = vld [vmem:[%s1 + $0x4c] sm:$0xf]
      %v218 = vld [vmem:[%s1 + $0x50] sm:$0xf]
      %v219 = vld [vmem:[%s1 + $0x54] sm:$0xf]
      %v220 = vld [vmem:[%s1 + $0x58] sm:$0xf]
      %v221 = vld [vmem:[%s1 + $0x5c] sm:$0xf]
      %v222 = vld [vmem:[%s1 + $0x60] sm:$0xf]
      %v223 = vld [vmem:[%s1 + $0x64] sm:$0xf]
      %v224 = vld [vmem:[%s1 + $0x68] sm:$0xf]
      %v226 = vunpack.c.l.b16 %v197
      %v227 = vunpack.c.h.b16 %v197
      %v228 = vpack.c.b16 %v226, %v226
      %v229 = vpack.c.b16 %v227, %v227
      %v258 = vunpack.c.l.b16 %v198
      %v259 = vunpack.c.l.b16 %v199
      %v260 = vunpack.c.l.b16 %v200
      %v261 = vunpack.c.l.b16 %v201
      %v262 = vunpack.c.l.b16 %v202
      %v263 = vunpack.c.l.b16 %v203
      %v264 = vunpack.c.l.b16 %v204
      %v265 = vunpack.c.l.b16 %v205
      %v266 = vunpack.c.l.b16 %v206
      %v267 = vunpack.c.l.b16 %v207
      %v268 = vunpack.c.l.b16 %v208
      %v269 = vunpack.c.l.b16 %v209
      %v270 = vunpack.c.l.b16 %v210
      %v271 = vunpack.c.l.b16 %v211
      %v272 = vunpack.c.l.b16 %v212
      %v273 = vunpack.c.l.b16 %v213
      %v274 = vunpack.c.l.b16 %v214
      %v275 = vunpack.c.l.b16 %v215
      %v276 = vunpack.c.l.b16 %v216
      %v277 = vunpack.c.l.b16 %v217
      %v278 = vunpack.c.l.b16 %v218
      %v279 = vunpack.c.l.b16 %v219
      %v280 = vunpack.c.l.b16 %v220
      %v281 = vunpack.c.l.b16 %v221
      %v282 = vunpack.c.l.b16 %v222
      %v283 = vunpack.c.l.b16 %v223
      %v284 = vunpack.c.l.b16 %v224
      %v285 = vpack.c.b16 %v259, %v258
      %v286 = vpack.c.b16 %v261, %v260
      %v287 = vpack.c.b16 %v263, %v262
      %v288 = vpack.c.b16 %v265, %v264
      %v289 = vpack.c.b16 %v267, %v266
      %v290 = vpack.c.b16 %v269, %v268
      %v291 = vpack.c.b16 %v271, %v270
      %v292 = vpack.c.b16 %v273, %v272
      %v293 = vpack.c.b16 %v275, %v274
      %v294 = vpack.c.b16 %v277, %v276
      %v295 = vpack.c.b16 %v279, %v278
      %v296 = vpack.c.b16 %v281, %v280
      %v297 = vpack.c.b16 %v283, %v282
      %v298 = vpack.c.b16 %v284, %v284
      %vm312 = vcmask 719872
      %v314 = vsel %vm312, %v229, 0
      %vm316 = vcmask 1043456
      %v318 = vsel %vm316, %v298, 0
      %320 = vmatprep.subr.bf16.mxu0 0
      %321 = vmatpush1.bf16.msra.mxu0 %v285
      %322 = vmatprep.subr.bf16.mxu0 0
      %323 = vmatpush1.bf16.msra.mxu0 %v286
      %324 = vmatprep.subr.bf16.mxu0 0
      %325 = vmatpush1.bf16.msra.mxu0 %v287
      %326 = vmatprep.subr.bf16.mxu0 0
      %327 = vmatpush1.bf16.msra.mxu0 %v288
      %328 = vmatprep.subr.bf16.mxu0 0
      %329 = vmatpush1.bf16.msra.mxu0 %v289
      %330 = vmatprep.subr.bf16.mxu0 0
      %331 = vmatpush1.bf16.msra.mxu0 %v290
      %332 = vmatprep.subr.bf16.mxu0 0
      %333 = vmatpush1.bf16.msra.mxu0 %v291
      %334 = vmatprep.subr.bf16.mxu0 0
      %335 = vmatpush1.bf16.msra.mxu0 %v292
      %336 = vmatprep.subr.bf16.mxu0 0
      %337 = vmatpush1.bf16.msra.mxu0 %v293
      %338 = vmatprep.subr.bf16.mxu0 0
      %339 = vmatpush1.bf16.msra.mxu0 %v294
      %340 = vmatprep.subr.bf16.mxu0 0
      %341 = vmatpush1.bf16.msra.mxu0 %v295
      %342 = vmatprep.subr.bf16.mxu0 0
      %343 = vmatpush1.bf16.msra.mxu0 %v296
      %344 = vmatprep.subr.bf16.mxu0 0
      %345 = vmatpush1.bf16.msra.mxu0 %v297
      %346 = vmatprep.subr.bf16.mxu0 0
      %347 = vmatpush1.bf16.msra.mxu0 %v318
      %348 = vmatprep.subr.bf16.mxu0 0
      %349 = vmatpush1.bf16.msra.mxu0 0
      %350 = vmatprep.subr.bf16.mxu0 0
      %351 = vmatpush1.bf16.msra.mxu0 0
      %352 = vmatprep.mubr.bf16.mxu0 %v314
      %353 = vmatmul.mubr.bf16.gmra.mrb[0].mxu0 %v228
      %v354 = vpop.f32.mrb[0].mxu0
      %v355 = vadd.f32 0.0, %v354
      %v356 = vpop.f32.mrb[0].mxu0
      %v357 = vpop.f32.mrb[0].mxu0
      %v358 = vpop.f32.mrb[0].mxu0
      %359 = vdwg.mxu0
      %v360 = vld [vmem:[%s2] sm:$0x1]
      %v362 = vlaneseq
      %v363 = vshrl.u32 %v362, 7
      %v364 = vsub.s32 0, %v363
      %v365 = vrot.slane %v360, %v364
      %v367 = vmul.f32 %v355, %v365
      %v368 = vld [vmem:[%s3] sm:$0x1]
      %v370 = vlaneseq
      %v371 = vshrl.u32 %v370, 7
      %v372 = vsub.s32 0, %v371
      %v373 = vrot.slane %v368, %v372
      %v375 = vadd.f32 %v367, %v373
      %v376 = vmax.f32 %v375, 0.0
      %v377 = vpack.c.bf16 %v376, %v376
      %vm378 = vcmask 60416
      %379 = vst.msk [vmem:[%s195] sm:$0xf] %vm378, %v377
      %p380 = scmp.lt.s32.totalorder %s15, 1
      %s381 = scalar_select %p380, %s15, 1
      %s382 = smul.addr %s381, 4
      %s383 = scalar_lea.vmem %s4, %s382
      // Predicated region
      $region37: #{hourglass_forward.8} parent=35 // pred_check
        %p384 = pneg %p122
      $region38: #{hourglass_forward.8} parent=35 // pred_check_branch
        %386 = sbr.rel (%p384) target = $region40
      $region39: #{hourglass_forward.8} parent=35 // pred_region
        _
      $region40: #{hourglass_forward.8} parent=35 // pred_fallthru
        _
    $region36: #{hourglass_forward.8} parent=5 // pred_fallthru
      _
    %p387 = scmp.le.s32.totalorder 2, %s10
    // Predicated region
    $region41: #{hourglass_forward.8} parent=5 // pred_check
      %p388 = pneg %p387
    $region42: #{hourglass_forward.8} parent=5 // pred_check_branch
      %390 = sbr.rel (%p388) target = $region44
    $region43: #{hourglass_forward.8} parent=5 // pred_region
      %s391 = ssub.s32 %s10, 2
      // Predicated region
      $region45: #{hourglass_forward.8} parent=43 // pred_check
        %p392 = pneg %p128
      $region46: #{hourglass_forward.8} parent=43 // pred_check_branch
        %394 = sbr.rel (%p392) target = $region48
      $region47: #{hourglass_forward.8} parent=43 // pred_region
        %p395 = scmp.lt.s32.totalorder %s16, 1
        %s396 = scalar_select %p395, %s16, 1
        %s397 = smul.addr %s396, 4
        %s398 = scalar_lea.vmem %s4, %s397
      $region48: #{hourglass_forward.8} parent=43 // pred_fallthru
        _
    $region44: #{hourglass_forward.8} parent=5 // pred_fallthru
      _
  $region6: #{hourglass_forward.8} parent=0 // loop_footer
    %s14 = sadd.s32 1, %s10
  $region7: #{hourglass_forward.8} parent=0 // loop_footer_branch
    %9 = sbr.rel target = $region3
  $region8: #{hourglass_forward.8} parent=0 // loop_exit
    _

// kernel: hourglass_forward.10
$region0: #{hourglass_forward.10}
  #allocation0 [shape = 'u32[]', space=smem, size = 0x4, offset = 0x4, fixed_abs, tag = 'smem constant byte address 0x4 - core index']
  #allocation1 [shape = 'u32[144,128]{1,0:T(1,128)}', space=vmem, size = 0x12000, scoped, tag = 'internal scratch']
  %s0 = inlined_call_operand.vmem [shape: bf16[16,64], index: 0, kind: input, shape index: {}]
  %s1 = inlined_call_operand.vmem [shape: bf16[64,64], index: 1, kind: input, shape index: {}]
  %s2 = inlined_call_operand.vmem [shape: f32[1,64], index: 2, kind: input, shape index: {}]
  %s3 = inlined_call_operand.vmem [shape: f32[1,64], index: 3, kind: input, shape index: {}]
  %s4 = inlined_call_operand.vmem [shape: f32[16,64], index: 4, kind: input, shape index: {}]
  %s5 = inlined_call_operand.vmem [shape: bf16[16,64], index: 5, kind: output, shape index: {}]
  %s6 = sld [smem:[#allocation0]]
  $region53: #{hourglass_forward.10} parent=0
    _
  %s8 = ssub.s32 1, %s6
  %s9 = scalar_select 0, %s8, %s6
  loop: start=0, step=1, limit=4
  $region2: #{hourglass_forward.10} parent=0 // loop_pre_header
    _
  $region3: #{hourglass_forward.10} parent=0 // loop_header
    %s11 = sphi 0, %s15
    %p12 = scmp.ge.s32.totalorder %s11, 4
    %s21 = sphi 0, %s23
    %s24 = sphi 0, %s21
    %s25 = sphi 0, %s24
    %s41 = sphi 0, %s25
    %s45 = sphi 0, %s45
    %s47 = sphi 0, %s45
    %s48 = sphi 0, %s47
    %s62 = sphi 0, %s48
    %s66 = sphi 0, %s66
    %s68 = sphi 0, %s66
    %s69 = sphi 0, %s68
    %s83 = sphi 0, %s69
    %s87 = sphi 0, %s87
    %s89 = sphi 0, %s87
    %s90 = sphi 0, %s89
    %s104 = sphi 0, %s90
    %s110 = sphi 0, %s112
    %s113 = sphi 0, %s110
    %s114 = sphi 0, %s113
    %s130 = sphi 0, %s114
    %s136 = sphi 0, %s138
    %s139 = sphi 0, %s136
    %s140 = sphi 0, %s139
    %s156 = sphi 0, %s140
  $region4: #{hourglass_forward.10} parent=0 // loop_header_branch
    %14 = sbr.rel (%p12) target = $region8
  $region5: #{hourglass_forward.10} parent=0 // loop_body
    %s16 = ssub.s32 %s11, 1
    %s17 = ssub.s32 %s11, 2
    %s18 = sadd.s32 %s11, 1
    %s19 = ssub.s32 %s11, %s18
    %p20 = scmp.eq.s32.totalorder %s19, 0
    %s22 = sadd.s32 %s21, 1
    %s23 = scalar_select %p20, %s21, %s22
    %p26 = pneg %p20
    %p27 = scmp.eq.s32.totalorder %s11, 1
    %p28 = por %p26, %p27
    %p29 = scmp.ne.s32.totalorder %s21, %s24
    %p30 = scmp.eq.s32.totalorder %s11, 0
    %p31 = por %p29, %p30
    %p32 = scmp.ne.s32.totalorder %s21, %s24
    %p33 = scmp.eq.s32.totalorder %s16, 1
    %p34 = por %p32, %p33
    %p35 = scmp.ne.s32.totalorder %s24, %s25
    %p36 = scmp.eq.s32.totalorder %s16, 0
    %p37 = por %p35, %p36
    %p38 = scmp.ne.s32.totalorder %s24, %s25
    %p39 = scmp.eq.s32.totalorder %s17, 1
    %p40 = por %p38, %p39
    %p42 = scmp.ne.s32.totalorder %s25, %s41
    %p43 = scmp.eq.s32.totalorder %s17, 0
    %p44 = por %p42, %p43
    %s46 = sadd.s32 %s45, 1
    %p49 = scmp.eq.s32.totalorder %s11, 1
    %p50 = scmp.ne.s32.totalorder %s45, %s47
    %p51 = scmp.eq.s32.totalorder %s11, 0
    %p52 = por %p50, %p51
    %p53 = scmp.ne.s32.totalorder %s45, %s47
    %p54 = scmp.eq.s32.totalorder %s16, 1
    %p55 = por %p53, %p54
    %p56 = scmp.ne.s32.totalorder %s47, %s48
    %p57 = scmp.eq.s32.totalorder %s16, 0
    %p58 = por %p56, %p57
    %p59 = scmp.ne.s32.totalorder %s47, %s48
    %p60 = scmp.eq.s32.totalorder %s17, 1
    %p61 = por %p59, %p60
    %p63 = scmp.ne.s32.totalorder %s48, %s62
    %p64 = scmp.eq.s32.totalorder %s17, 0
    %p65 = por %p63, %p64
    %s67 = sadd.s32 %s66, 1
    %p70 = scmp.eq.s32.totalorder %s11, 1
    %p71 = scmp.ne.s32.totalorder %s66, %s68
    %p72 = scmp.eq.s32.totalorder %s11, 0
    %p73 = por %p71, %p72
    %p74 = scmp.ne.s32.totalorder %s66, %s68
    %p75 = scmp.eq.s32.totalorder %s16, 1
    %p76 = por %p74, %p75
    %p77 = scmp.ne.s32.totalorder %s68, %s69
    %p78 = scmp.eq.s32.totalorder %s16, 0
    %p79 = por %p77, %p78
    %p80 = scmp.ne.s32.totalorder %s68, %s69
    %p81 = scmp.eq.s32.totalorder %s17, 1
    %p82 = por %p80, %p81
    %p84 = scmp.ne.s32.totalorder %s69, %s83
    %p85 = scmp.eq.s32.totalorder %s17, 0
    %p86 = por %p84, %p85
    %s88 = sadd.s32 %s87, 1
    %p91 = scmp.eq.s32.totalorder %s11, 1
    %p92 = scmp.ne.s32.totalorder %s87, %s89
    %p93 = scmp.eq.s32.totalorder %s11, 0
    %p94 = por %p92, %p93
    %p95 = scmp.ne.s32.totalorder %s87, %s89
    %p96 = scmp.eq.s32.totalorder %s16, 1
    %p97 = por %p95, %p96
    %p98 = scmp.ne.s32.totalorder %s89, %s90
    %p99 = scmp.eq.s32.totalorder %s16, 0
    %p100 = por %p98, %p99
    %p101 = scmp.ne.s32.totalorder %s89, %s90
    %p102 = scmp.eq.s32.totalorder %s17, 1
    %p103 = por %p101, %p102
    %p105 = scmp.ne.s32.totalorder %s90, %s104
    %p106 = scmp.eq.s32.totalorder %s17, 0
    %p107 = por %p105, %p106
    %s108 = ssub.s32 %s11, %s18
    %p109 = scmp.eq.s32.totalorder %s108, 0
    %s111 = sadd.s32 %s110, 1
    %s112 = scalar_select %p109, %s110, %s111
    %p115 = pneg %p109
    %p116 = scmp.eq.s32.totalorder %s11, 1
    %p117 = por %p115, %p116
    %p118 = scmp.ne.s32.totalorder %s110, %s113
    %p119 = scmp.eq.s32.totalorder %s11, 0
    %p120 = por %p118, %p119
    %p121 = scmp.ne.s32.totalorder %s110, %s113
    %p122 = scmp.eq.s32.totalorder %s16, 1
    %p123 = por %p121, %p122
    %p124 = scmp.ne.s32.totalorder %s113, %s114
    %p125 = scmp.eq.s32.totalorder %s16, 0
    %p126 = por %p124, %p125
    %p127 = scmp.ne.s32.totalorder %s113, %s114
    %p128 = scmp.eq.s32.totalorder %s17, 1
    %p129 = por %p127, %p128
    %p131 = scmp.ne.s32.totalorder %s114, %s130
    %p132 = scmp.eq.s32.totalorder %s17, 0
    %p133 = por %p131, %p132
    %s134 = ssub.s32 %s11, %s18
    %p135 = scmp.eq.s32.totalorder %s134, 0
    %s137 = sadd.s32 %s136, 1
    %s138 = scalar_select %p135, %s136, %s137
    %p141 = pneg %p135
    %p142 = scmp.eq.s32.totalorder %s11, 1
    %p143 = por %p141, %p142
    %p144 = scmp.ne.s32.totalorder %s136, %s139
    %p145 = scmp.eq.s32.totalorder %s11, 0
    %p146 = por %p144, %p145
    %p147 = scmp.ne.s32.totalorder %s136, %s139
    %p148 = scmp.eq.s32.totalorder %s16, 1
    %p149 = por %p147, %p148
    %p150 = scmp.ne.s32.totalorder %s139, %s140
    %p151 = scmp.eq.s32.totalorder %s16, 0
    %p152 = por %p150, %p151
    %p153 = scmp.ne.s32.totalorder %s139, %s140
    %p154 = scmp.eq.s32.totalorder %s17, 1
    %p155 = por %p153, %p154
    %p157 = scmp.ne.s32.totalorder %s140, %s156
    %p158 = scmp.eq.s32.totalorder %s17, 0
    %p159 = por %p157, %p158
    %p160 = scmp.le.s32.totalorder 1, %s11
    %p161 = scmp.lt.s32.totalorder %s11, 3
    %p162 = pnand %p160, %p161
    %p163 = pneg %p162
    // Predicated region
    $region9: #{hourglass_forward.10} parent=5 // pred_check
      _
    $region10: #{hourglass_forward.10} parent=5 // pred_check_branch
      %165 = sbr.rel (%p162) target = $region12
    $region11: #{hourglass_forward.10} parent=5 // pred_region
      %s166 = ssub.s32 %s11, 1
      // Predicated region
      $region13: #{hourglass_forward.10} parent=11 // pred_check
        %p167 = pneg %p58
      $region14: #{hourglass_forward.10} parent=11 // pred_check_branch
        %169 = sbr.rel (%p167) target = $region16
      $region15: #{hourglass_forward.10} parent=11 // pred_region
        _
      $region16: #{hourglass_forward.10} parent=11 // pred_fallthru
        _
      // Predicated region
      $region17: #{hourglass_forward.10} parent=11 // pred_check
        %p170 = pneg %p79
      $region18: #{hourglass_forward.10} parent=11 // pred_check_branch
        %172 = sbr.rel (%p170) target = $region20
      $region19: #{hourglass_forward.10} parent=11 // pred_region
        _
      $region20: #{hourglass_forward.10} parent=11 // pred_fallthru
        _
      // Predicated region
      $region21: #{hourglass_forward.10} parent=11 // pred_check
        %p173 = pneg %p100
      $region22: #{hourglass_forward.10} parent=11 // pred_check_branch
        %175 = sbr.rel (%p173) target = $region24
      $region23: #{hourglass_forward.10} parent=11 // pred_region
        _
      $region24: #{hourglass_forward.10} parent=11 // pred_fallthru
        _
    $region12: #{hourglass_forward.10} parent=5 // pred_fallthru
      _
    %p176 = scmp.lt.s32.totalorder %s11, 2
    // Predicated region
    $region25: #{hourglass_forward.10} parent=5 // pred_check
      %p177 = pneg %p176
    $region26: #{hourglass_forward.10} parent=5 // pred_check_branch
      %179 = sbr.rel (%p177) target = $region28
    $region27: #{hourglass_forward.10} parent=5 // pred_region
      // Predicated region
      $region29: #{hourglass_forward.10} parent=27 // pred_check
        %p180 = pneg %p31
      $region30: #{hourglass_forward.10} parent=27 // pred_check_branch
        %182 = sbr.rel (%p180) target = $region32
      $region31: #{hourglass_forward.10} parent=27 // pred_region
        %p183 = scmp.lt.s32.totalorder %s11, 1
        %s184 = scalar_select %p183, %s11, 1
        %s185 = smul.addr %s184, 4
        %s186 = scalar_lea.vmem %s0, %s185
      $region32: #{hourglass_forward.10} parent=27 // pred_fallthru
        _
      // Predicated region
      $region33: #{hourglass_forward.10} parent=27 // pred_check
        %p187 = pneg %p120
      $region34: #{hourglass_forward.10} parent=27 // pred_check_branch
        %189 = sbr.rel (%p187) target = $region36
      $region35: #{hourglass_forward.10} parent=27 // pred_region
        %p190 = scmp.lt.s32.totalorder %s11, 1
        %s191 = scalar_select %p190, %s11, 1
        %s192 = smul.addr %s191, 8
        %s193 = scalar_lea.vmem %s4, %s192
      $region36: #{hourglass_forward.10} parent=27 // pred_fallthru
        _
    $region28: #{hourglass_forward.10} parent=5 // pred_fallthru
      _
    %p194 = scmp.le.s32.totalorder 1, %s11
    %p195 = scmp.lt.s32.totalorder %s11, 3
    %p196 = pnand %p194, %p195
    %p197 = pneg %p196
    // Predicated region
    $region37: #{hourglass_forward.10} parent=5 // pred_check
      _
    $region38: #{hourglass_forward.10} parent=5 // pred_check_branch
      %199 = sbr.rel (%p196) target = $region40
    $region39: #{hourglass_forward.10} parent=5 // pred_region
      %s200 = ssub.s32 %s11, 1
      %p201 = scmp.lt.s32.totalorder %s16, 1
      %s202 = scalar_select %p201, %s16, 1
      %s203 = smul.addr %s202, 4
      %s204 = scalar_lea.vmem %s0, %s203
      %p205 = pneg %p37
      %p206 = pneg %p34
      %p207 = pneg %p58
      %p208 = pneg %p55
      %p209 = pneg %p79
      %p210 = pneg %p76
      %p211 = pneg %p100
      %p212 = pneg %p97
      %p213 = scmp.lt.s32.totalorder %s16, 1
      %s214 = scalar_select %p213, %s16, 1
      %s215 = smul.addr %s214, 8
      %s216 = scalar_lea.vmem %s4, %s215
      %p217 = pneg %p126
      %p218 = pneg %p123
      %p219 = pneg %p152
      %p220 = pneg %p149
      %p221 = scmp.lt.s32.totalorder %s16, 1
      %s222 = scalar_select %p221, %s16, 1
      %s223 = smul.addr %s222, 4
      %s224 = scalar_lea.vmem %s5, %s223
      %p225 = scmp.lt.s32.totalorder %s16, 1
      %s226 = scalar_select %p225, %s16, 1
      %s227 = smul.addr %s226, 4
      %s228 = scalar_lea.vmem %s0, %s227
      %p229 = scmp.lt.s32.totalorder %s16, 1
      %s230 = scalar_select %p229, %s16, 1
      %s231 = smul.addr %s230, 8
      %s232 = scalar_lea.vmem %s4, %s231
      %p233 = scmp.lt.s32.totalorder %s16, 1
      %s234 = scalar_select %p233, %s16, 1
      %s235 = smul.addr %s234, 4
      %s236 = scalar_lea.vmem %s5, %s235
      %v238 = vld [vmem:[%s228] sm:$0xf]
      %v239 = vld [vmem:[%s1] sm:$0xf]
      %v240 = vld [vmem:[%s1 + $0x4] sm:$0xf]
      %v241 = vld [vmem:[%s1 + $0x8] sm:$0xf]
      %v242 = vld [vmem:[%s1 + $0xc] sm:$0xf]
      %v243 = vld [vmem:[%s1 + $0x10] sm:$0xf]
      %v244 = vld [vmem:[%s1 + $0x14] sm:$0xf]
      %v245 = vld [vmem:[%s1 + $0x18] sm:$0xf]
      %v246 = vld [vmem:[%s1 + $0x1c] sm:$0xf]
      %v255 = vunpack.c.l.b16 %v239
      %v256 = vunpack.c.l.b16 %v240
      %v257 = vunpack.c.l.b16 %v241
      %v258 = vunpack.c.l.b16 %v242
      %v259 = vunpack.c.l.b16 %v243
      %v260 = vunpack.c.l.b16 %v244
      %v261 = vunpack.c.l.b16 %v245
      %v262 = vunpack.c.l.b16 %v246
      %v263 = vpack.c.b16 %v256, %v255
      %v264 = vpack.c.b16 %v258, %v257
      %v265 = vpack.c.b16 %v260, %v259
      %v266 = vpack.c.b16 %v262, %v261
      %vm271 = vcmask 523264
      %v273 = vsel %vm271, %v238, 0
      %275 = vmatprep.subr.bf16.mxu0 0
      %276 = vmatpush1.bf16.msra.mxu0 %v263
      %277 = vmatprep.subr.bf16.mxu0 0
      %278 = vmatpush1.bf16.msra.mxu0 %v264
      %279 = vmatprep.subr.bf16.mxu0 0
      %280 = vmatpush1.bf16.msra.mxu0 %v265
      %281 = vmatprep.subr.bf16.mxu0 0
      %282 = vmatpush1.bf16.msra.mxu0 %v266
      %283 = vmatprep.subr.bf16.mxu0 0
      %284 = vmatpush1.bf16.msra.mxu0 0
      %285 = vmatprep.subr.bf16.mxu0 0
      %286 = vmatpush1.bf16.msra.mxu0 0
      %287 = vmatprep.subr.bf16.mxu0 0
      %288 = vmatpush1.bf16.msra.mxu0 0
      %289 = vmatprep.subr.bf16.mxu0 0
      %290 = vmatpush1.bf16.msra.mxu0 0
      %291 = vmatprep.subr.bf16.mxu0 0
      %292 = vmatpush1.bf16.msra.mxu0 0
      %293 = vmatprep.subr.bf16.mxu0 0
      %294 = vmatpush1.bf16.msra.mxu0 0
      %295 = vmatprep.subr.bf16.mxu0 0
      %296 = vmatpush1.bf16.msra.mxu0 0
      %297 = vmatprep.subr.bf16.mxu0 0
      %298 = vmatpush1.bf16.msra.mxu0 0
      %299 = vmatprep.subr.bf16.mxu0 0
      %300 = vmatpush1.bf16.msra.mxu0 0
      %301 = vmatprep.subr.bf16.mxu0 0
      %302 = vmatpush1.bf16.msra.mxu0 0
      %303 = vmatprep.subr.bf16.mxu0 0
      %304 = vmatpush1.bf16.msra.mxu0 0
      %305 = vmatprep.subr.bf16.mxu0 0
      %306 = vmatpush1.bf16.msra.mxu0 0
      %307 = vmatprep.mubr.bf16.mxu0 0
      %308 = vmatmul.mubr.bf16.gmra.mrb[0].mxu0 %v273
      %v309 = vpop.f32.mrb[0].mxu0
      %v310 = vadd.f32 0.0, %v309
      %v311 = vpop.f32.mrb[0].mxu0
      %v312 = vpop.f32.mrb[0].mxu0
      %v313 = vpop.f32.mrb[0].mxu0
      %314 = vdwg.mxu0
      %v315 = vld [vmem:[%s2] sm:$0x1]
      %v317 = vlaneseq
      %v318 = vshrl.u32 %v317, 7
      %v319 = vsub.s32 0, %v318
      %v320 = vrot.slane %v315, %v319
      %v322 = vmul.f32 %v310, %v320
      %v323 = vld [vmem:[%s3] sm:$0x1]
      %v325 = vlaneseq
      %v326 = vshrl.u32 %v325, 7
      %v327 = vsub.s32 0, %v326
      %v328 = vrot.slane %v323, %v327
      %v330 = vadd.f32 %v322, %v328
      %v331 = vld [vmem:[%s232] sm:$0xff]
      %v332 = vadd.f32 %v330, %v331
      %v333 = vmax.f32 %v332, 0.0
      %v334 = vpack.c.bf16 %v333, %v333
      %vm335 = vcmask 519168
      %336 = vst.msk [vmem:[%s236] sm:$0xf] %vm335, %v334
      %p337 = scmp.lt.s32.totalorder %s16, 1
      %s338 = scalar_select %p337, %s16, 1
      %s339 = smul.addr %s338, 4
      %s340 = scalar_lea.vmem %s5, %s339
      // Predicated region
      $region41: #{hourglass_forward.10} parent=39 // pred_check
        %p341 = pneg %p149
      $region42: #{hourglass_forward.10} parent=39 // pred_check_branch
        %343 = sbr.rel (%p341) target = $region44
      $region43: #{hourglass_forward.10} parent=39 // pred_region
        _
      $region44: #{hourglass_forward.10} parent=39 // pred_fallthru
        _
    $region40: #{hourglass_forward.10} parent=5 // pred_fallthru
      _
    %p344 = scmp.le.s32.totalorder 2, %s11
    // Predicated region
    $region45: #{hourglass_forward.10} parent=5 // pred_check
      %p345 = pneg %p344
    $region46: #{hourglass_forward.10} parent=5 // pred_check_branch
      %347 = sbr.rel (%p345) target = $region48
    $region47: #{hourglass_forward.10} parent=5 // pred_region
      %s348 = ssub.s32 %s11, 2
      // Predicated region
      $region49: #{hourglass_forward.10} parent=47 // pred_check
        %p349 = pneg %p155
      $region50: #{hourglass_forward.10} parent=47 // pred_check_branch
        %351 = sbr.rel (%p349) target = $region52
      $region51: #{hourglass_forward.10} parent=47 // pred_region
        %p352 = scmp.lt.s32.totalorder %s17, 1
        %s353 = scalar_select %p352, %s17, 1
        %s354 = smul.addr %s353, 4
        %s355 = scalar_lea.vmem %s5, %s354
      $region52: #{hourglass_forward.10} parent=47 // pred_fallthru
        _
    $region48: #{hourglass_forward.10} parent=5 // pred_fallthru
      _
  $region6: #{hourglass_forward.10} parent=0 // loop_footer
    %s15 = sadd.s32 1, %s11
  $region7: #{hourglass_forward.10} parent=0 // loop_footer_branch
    %10 = sbr.rel target = $region3
  $region8: #{hourglass_forward.10} parent=0 // loop_exit
    _

// kernel: hourglass_forward.11
$region0: #{hourglass_forward.11}
  #allocation0 [shape = 'u32[]', space=smem, size = 0x4, offset = 0x4, fixed_abs, tag = 'smem constant byte address 0x4 - core index']
  #allocation1 [shape = 'u32[144,128]{1,0:T(1,128)}', space=vmem, size = 0x12000, scoped, tag = 'internal scratch']
  %s0 = inlined_call_operand.vmem [shape: bf16[128,64], index: 0, kind: input, shape index: {}]
  %s1 = inlined_call_operand.vmem [shape: bf16[64,32], index: 1, kind: input, shape index: {}]
  %s2 = inlined_call_operand.vmem [shape: f32[1,32], index: 2, kind: input, shape index: {}]
  %s3 = inlined_call_operand.vmem [shape: f32[1,32], index: 3, kind: input, shape index: {}]
  %s4 = inlined_call_operand.vmem [shape: f32[128,32], index: 4, kind: output, shape index: {}]
  %s5 = sld [smem:[#allocation0]]
  $region49: #{hourglass_forward.11} parent=0
    _
  %s7 = ssub.s32 1, %s5
  %s8 = scalar_select 0, %s7, %s5
  loop: start=0, step=1, limit=4
  $region2: #{hourglass_forward.11} parent=0 // loop_pre_header
    _
  $region3: #{hourglass_forward.11} parent=0 // loop_header
    %s10 = sphi 0, %s14
    %p11 = scmp.ge.s32.totalorder %s10, 4
    %s20 = sphi 0, %s22
    %s23 = sphi 0, %s20
    %s24 = sphi 0, %s23
    %s40 = sphi 0, %s24
    %s44 = sphi 0, %s44
    %s46 = sphi 0, %s44
    %s47 = sphi 0, %s46
    %s61 = sphi 0, %s47
    %s65 = sphi 0, %s65
    %s67 = sphi 0, %s65
    %s68 = sphi 0, %s67
    %s82 = sphi 0, %s68
    %s86 = sphi 0, %s86
    %s88 = sphi 0, %s86
    %s89 = sphi 0, %s88
    %s103 = sphi 0, %s89
    %s109 = sphi 0, %s111
    %s112 = sphi 0, %s109
    %s113 = sphi 0, %s112
    %s129 = sphi 0, %s113
  $region4: #{hourglass_forward.11} parent=0 // loop_header_branch
    %13 = sbr.rel (%p11) target = $region8
  $region5: #{hourglass_forward.11} parent=0 // loop_body
    %s15 = ssub.s32 %s10, 1
    %s16 = ssub.s32 %s10, 2
    %s17 = sadd.s32 %s10, 1
    %s18 = ssub.s32 %s10, %s17
    %p19 = scmp.eq.s32.totalorder %s18, 0
    %s21 = sadd.s32 %s20, 1
    %s22 = scalar_select %p19, %s20, %s21
    %p25 = pneg %p19
    %p26 = scmp.eq.s32.totalorder %s10, 1
    %p27 = por %p25, %p26
    %p28 = scmp.ne.s32.totalorder %s20, %s23
    %p29 = scmp.eq.s32.totalorder %s10, 0
    %p30 = por %p28, %p29
    %p31 = scmp.ne.s32.totalorder %s20, %s23
    %p32 = scmp.eq.s32.totalorder %s15, 1
    %p33 = por %p31, %p32
    %p34 = scmp.ne.s32.totalorder %s23, %s24
    %p35 = scmp.eq.s32.totalorder %s15, 0
    %p36 = por %p34, %p35
    %p37 = scmp.ne.s32.totalorder %s23, %s24
    %p38 = scmp.eq.s32.totalorder %s16, 1
    %p39 = por %p37, %p38
    %p41 = scmp.ne.s32.totalorder %s24, %s40
    %p42 = scmp.eq.s32.totalorder %s16, 0
    %p43 = por %p41, %p42
    %s45 = sadd.s32 %s44, 1
    %p48 = scmp.eq.s32.totalorder %s10, 1
    %p49 = scmp.ne.s32.totalorder %s44, %s46
    %p50 = scmp.eq.s32.totalorder %s10, 0
    %p51 = por %p49, %p50
    %p52 = scmp.ne.s32.totalorder %s44, %s46
    %p53 = scmp.eq.s32.totalorder %s15, 1
    %p54 = por %p52, %p53
    %p55 = scmp.ne.s32.totalorder %s46, %s47
    %p56 = scmp.eq.s32.totalorder %s15, 0
    %p57 = por %p55, %p56
    %p58 = scmp.ne.s32.totalorder %s46, %s47
    %p59 = scmp.eq.s32.totalorder %s16, 1
    %p60 = por %p58, %p59
    %p62 = scmp.ne.s32.totalorder %s47, %s61
    %p63 = scmp.eq.s32.totalorder %s16, 0
    %p64 = por %p62, %p63
    %s66 = sadd.s32 %s65, 1
    %p69 = scmp.eq.s32.totalorder %s10, 1
    %p70 = scmp.ne.s32.totalorder %s65, %s67
    %p71 = scmp.eq.s32.totalorder %s10, 0
    %p72 = por %p70, %p71
    %p73 = scmp.ne.s32.totalorder %s65, %s67
    %p74 = scmp.eq.s32.totalorder %s15, 1
    %p75 = por %p73, %p74
    %p76 = scmp.ne.s32.totalorder %s67, %s68
    %p77 = scmp.eq.s32.totalorder %s15, 0
    %p78 = por %p76, %p77
    %p79 = scmp.ne.s32.totalorder %s67, %s68
    %p80 = scmp.eq.s32.totalorder %s16, 1
    %p81 = por %p79, %p80
    %p83 = scmp.ne.s32.totalorder %s68, %s82
    %p84 = scmp.eq.s32.totalorder %s16, 0
    %p85 = por %p83, %p84
    %s87 = sadd.s32 %s86, 1
    %p90 = scmp.eq.s32.totalorder %s10, 1
    %p91 = scmp.ne.s32.totalorder %s86, %s88
    %p92 = scmp.eq.s32.totalorder %s10, 0
    %p93 = por %p91, %p92
    %p94 = scmp.ne.s32.totalorder %s86, %s88
    %p95 = scmp.eq.s32.totalorder %s15, 1
    %p96 = por %p94, %p95
    %p97 = scmp.ne.s32.totalorder %s88, %s89
    %p98 = scmp.eq.s32.totalorder %s15, 0
    %p99 = por %p97, %p98
    %p100 = scmp.ne.s32.totalorder %s88, %s89
    %p101 = scmp.eq.s32.totalorder %s16, 1
    %p102 = por %p100, %p101
    %p104 = scmp.ne.s32.totalorder %s89, %s103
    %p105 = scmp.eq.s32.totalorder %s16, 0
    %p106 = por %p104, %p105
    %s107 = ssub.s32 %s10, %s17
    %p108 = scmp.eq.s32.totalorder %s107, 0
    %s110 = sadd.s32 %s109, 1
    %s111 = scalar_select %p108, %s109, %s110
    %p114 = pneg %p108
    %p115 = scmp.eq.s32.totalorder %s10, 1
    %p116 = por %p114, %p115
    %p117 = scmp.ne.s32.totalorder %s109, %s112
    %p118 = scmp.eq.s32.totalorder %s10, 0
    %p119 = por %p117, %p118
    %p120 = scmp.ne.s32.totalorder %s109, %s112
    %p121 = scmp.eq.s32.totalorder %s15, 1
    %p122 = por %p120, %p121
    %p123 = scmp.ne.s32.totalorder %s112, %s113
    %p124 = scmp.eq.s32.totalorder %s15, 0
    %p125 = por %p123, %p124
    %p126 = scmp.ne.s32.totalorder %s112, %s113
    %p127 = scmp.eq.s32.totalorder %s16, 1
    %p128 = por %p126, %p127
    %p130 = scmp.ne.s32.totalorder %s113, %s129
    %p131 = scmp.eq.s32.totalorder %s16, 0
    %p132 = por %p130, %p131
    %p133 = scmp.le.s32.totalorder 1, %s10
    %p134 = scmp.lt.s32.totalorder %s10, 3
    %p135 = pnand %p133, %p134
    %p136 = pneg %p135
    // Predicated region
    $region9: #{hourglass_forward.11} parent=5 // pred_check
      _
    $region10: #{hourglass_forward.11} parent=5 // pred_check_branch
      %138 = sbr.rel (%p135) target = $region12
    $region11: #{hourglass_forward.11} parent=5 // pred_region
      %s139 = ssub.s32 %s10, 1
      // Predicated region
      $region13: #{hourglass_forward.11} parent=11 // pred_check
        %p140 = pneg %p57
      $region14: #{hourglass_forward.11} parent=11 // pred_check_branch
        %142 = sbr.rel (%p140) target = $region16
      $region15: #{hourglass_forward.11} parent=11 // pred_region
        _
      $region16: #{hourglass_forward.11} parent=11 // pred_fallthru
        _
      // Predicated region
      $region17: #{hourglass_forward.11} parent=11 // pred_check
        %p143 = pneg %p78
      $region18: #{hourglass_forward.11} parent=11 // pred_check_branch
        %145 = sbr.rel (%p143) target = $region20
      $region19: #{hourglass_forward.11} parent=11 // pred_region
        _
      $region20: #{hourglass_forward.11} parent=11 // pred_fallthru
        _
      // Predicated region
      $region21: #{hourglass_forward.11} parent=11 // pred_check
        %p146 = pneg %p99
      $region22: #{hourglass_forward.11} parent=11 // pred_check_branch
        %148 = sbr.rel (%p146) target = $region24
      $region23: #{hourglass_forward.11} parent=11 // pred_region
        _
      $region24: #{hourglass_forward.11} parent=11 // pred_fallthru
        _
    $region12: #{hourglass_forward.11} parent=5 // pred_fallthru
      _
    %p149 = scmp.lt.s32.totalorder %s10, 2
    // Predicated region
    $region25: #{hourglass_forward.11} parent=5 // pred_check
      %p150 = pneg %p149
    $region26: #{hourglass_forward.11} parent=5 // pred_check_branch
      %152 = sbr.rel (%p150) target = $region28
    $region27: #{hourglass_forward.11} parent=5 // pred_region
      // Predicated region
      $region29: #{hourglass_forward.11} parent=27 // pred_check
        %p153 = pneg %p30
      $region30: #{hourglass_forward.11} parent=27 // pred_check_branch
        %155 = sbr.rel (%p153) target = $region32
      $region31: #{hourglass_forward.11} parent=27 // pred_region
        %s156 = smul.u32 8, %s10
        %p157 = scmp.lt.s32.totalorder %s156, 15
        %s158 = scalar_select %p157, %s156, 15
        %s159 = smul.addr %s158, 4
        %s160 = scalar_lea.vmem %s0, %s159
        %s161 = smul.u32 8, %s10
      $region32: #{hourglass_forward.11} parent=27 // pred_fallthru
        _
    $region28: #{hourglass_forward.11} parent=5 // pred_fallthru
      _
    %p162 = scmp.le.s32.totalorder 1, %s10
    %p163 = scmp.lt.s32.totalorder %s10, 3
    %p164 = pnand %p162, %p163
    %p165 = pneg %p164
    // Predicated region
    $region33: #{hourglass_forward.11} parent=5 // pred_check
      _
    $region34: #{hourglass_forward.11} parent=5 // pred_check_branch
      %167 = sbr.rel (%p164) target = $region36
    $region35: #{hourglass_forward.11} parent=5 // pred_region
      %s168 = ssub.s32 %s10, 1
      %s169 = smul.u32 8, %s15
      %p170 = scmp.lt.s32.totalorder %s169, 15
      %s171 = scalar_select %p170, %s169, 15
      %s172 = smul.addr %s171, 4
      %s173 = scalar_lea.vmem %s0, %s172
      %p174 = pneg %p36
      %p175 = pneg %p33
      %p176 = pneg %p57
      %p177 = pneg %p54
      %p178 = pneg %p78
      %p179 = pneg %p75
      %p180 = pneg %p99
      %p181 = pneg %p96
      %p182 = pneg %p125
      %p183 = pneg %p122
      %s184 = smul.u32 8, %s15
      %p185 = scmp.lt.s32.totalorder %s184, 15
      %s186 = scalar_select %p185, %s184, 15
      %s187 = smul.addr %s186, 8
      %s188 = scalar_lea.vmem %s4, %s187
      %s189 = smul.u32 8, %s15
      %p190 = scmp.lt.s32.totalorder %s189, 15
      %s191 = scalar_select %p190, %s189, 15
      %s192 = smul.addr %s191, 4
      %s193 = scalar_lea.vmem %s0, %s192
      %s194 = smul.u32 8, %s15
      %s195 = smul.u32 8, %s15
      %p196 = scmp.lt.s32.totalorder %s195, 15
      %s197 = scalar_select %p196, %s195, 15
      %s198 = smul.addr %s197, 8
      %s199 = scalar_lea.vmem %s4, %s198
      %s200 = smul.u32 8, %s15
      %v202 = vld [vmem:[%s193] sm:$0xf]
      %v203 = vld [vmem:[%s193 + $0x4] sm:$0xf]
      %v204 = vld [vmem:[%s193 + $0x8] sm:$0xf]
      %v205 = vld [vmem:[%s193 + $0xc] sm:$0xf]
      %v206 = vld [vmem:[%s193 + $0x10] sm:$0xf]
      %v207 = vld [vmem:[%s193 + $0x14] sm:$0xf]
      %v208 = vld [vmem:[%s193 + $0x18] sm:$0xf]
      %v209 = vld [vmem:[%s193 + $0x1c] sm:$0xf]
      %v210 = vld [vmem:[%s1] sm:$0xf]
      %v211 = vld [vmem:[%s1 + $0x4] sm:$0xf]
      %v212 = vld [vmem:[%s1 + $0x8] sm:$0xf]
      %v213 = vld [vmem:[%s1 + $0xc] sm:$0xf]
      %v214 = vld [vmem:[%s1 + $0x10] sm:$0xf]
      %v215 = vld [vmem:[%s1 + $0x14] sm:$0xf]
      %v216 = vld [vmem:[%s1 + $0x18] sm:$0xf]
      %v217 = vld [vmem:[%s1 + $0x1c] sm:$0xf]
      %v226 = vunpack.c.l.b16 %v202
      %v227 = vunpack.c.l.b16 %v203
      %v228 = vunpack.c.l.b16 %v204
      %v229 = vunpack.c.l.b16 %v205
      %v230 = vunpack.c.l.b16 %v206
      %v231 = vunpack.c.l.b16 %v207
      %v232 = vunpack.c.l.b16 %v208
      %v233 = vunpack.c.l.b16 %v209
      %v234 = vpack.c.b16 %v227, %v226
      %v235 = vpack.c.b16 %v229, %v228
      %v236 = vpack.c.b16 %v231, %v230
      %v237 = vpack.c.b16 %v233, %v232
      %v246 = vunpack.c.l.b16 %v210
      %v247 = vunpack.c.l.b16 %v211
      %v248 = vunpack.c.l.b16 %v212
      %v249 = vunpack.c.l.b16 %v213
      %v250 = vunpack.c.l.b16 %v214
      %v251 = vunpack.c.l.b16 %v215
      %v252 = vunpack.c.l.b16 %v216
      %v253 = vunpack.c.l.b16 %v217
      %v254 = vpack.c.b16 %v247, %v246
      %v255 = vpack.c.b16 %v249, %v248
      %v256 = vpack.c.b16 %v251, %v250
      %v257 = vpack.c.b16 %v253, %v252
      %vm262 = vcmask 523264
      %v264 = vsel %vm262, %v234, 0
      %v267 = vsel %vm262, %v235, 0
      %v270 = vsel %vm262, %v236, 0
      %v273 = vsel %vm262, %v237, 0
      %275 = vmatprep.subr.bf16.mxu0 0
      %276 = vmatpush1.bf16.msra.mxu0 %v254
      %277 = vmatprep.subr.bf16.mxu0 0
      %278 = vmatpush1.bf16.msra.mxu0 %v255
      %279 = vmatprep.subr.bf16.mxu0 0
      %280 = vmatpush1.bf16.msra.mxu0 %v256
      %281 = vmatprep.subr.bf16.mxu0 0
      %282 = vmatpush1.bf16.msra.mxu0 %v257
      %283 = vmatprep.subr.bf16.mxu0 0
      %284 = vmatpush1.bf16.msra.mxu0 0
      %285 = vmatprep.subr.bf16.mxu0 0
      %286 = vmatpush1.bf16.msra.mxu0 0
      %287 = vmatprep.subr.bf16.mxu0 0
      %288 = vmatpush1.bf16.msra.mxu0 0
      %289 = vmatprep.subr.bf16.mxu0 0
      %290 = vmatpush1.bf16.msra.mxu0 0
      %291 = vmatprep.subr.bf16.mxu0 0
      %292 = vmatpush1.bf16.msra.mxu0 0
      %293 = vmatprep.subr.bf16.mxu0 0
      %294 = vmatpush1.bf16.msra.mxu0 0
      %295 = vmatprep.subr.bf16.mxu0 0
      %296 = vmatpush1.bf16.msra.mxu0 0
      %297 = vmatprep.subr.bf16.mxu0 0
      %298 = vmatpush1.bf16.msra.mxu0 0
      %299 = vmatprep.subr.bf16.mxu0 0
      %300 = vmatpush1.bf16.msra.mxu0 0
      %301 = vmatprep.subr.bf16.mxu0 0
      %302 = vmatpush1.bf16.msra.mxu0 0
      %303 = vmatprep.subr.bf16.mxu0 0
      %304 = vmatpush1.bf16.msra.mxu0 0
      %305 = vmatprep.subr.bf16.mxu0 0
      %306 = vmatpush1.bf16.msra.mxu0 0
      %307 = vmatprep.mubr.bf16.mxu0 0
      %308 = vmatmul.mubr.bf16.gmra.mrb[0].mxu0 %v264
      %v309 = vpop.f32.mrb[0].mxu0
      %v310 = vadd.f32 0.0, %v309
      %v311 = vpop.f32.mrb[0].mxu0
      %v312 = vpop.f32.mrb[0].mxu0
      %v313 = vadd.f32 0.0, %v312
      %v314 = vpop.f32.mrb[0].mxu0
      %315 = vmatprep.mubr.bf16.mxu0 0
      %316 = vmatmul.mubr.bf16.gmra.mrb[0].mxu0 %v267
      %v317 = vpop.f32.mrb[0].mxu0
      %v318 = vadd.f32 0.0, %v317
      %v319 = vpop.f32.mrb[0].mxu0
      %v320 = vpop.f32.mrb[0].mxu0
      %v321 = vadd.f32 0.0, %v320
      %v322 = vpop.f32.mrb[0].mxu0
      %323 = vmatprep.mubr.bf16.mxu0 0
      %324 = vmatmul.mubr.bf16.gmra.mrb[0].mxu0 %v270
      %v325 = vpop.f32.mrb[0].mxu0
      %v326 = vadd.f32 0.0, %v325
      %v327 = vpop.f32.mrb[0].mxu0
      %v328 = vpop.f32.mrb[0].mxu0
      %v329 = vadd.f32 0.0, %v328
      %v330 = vpop.f32.mrb[0].mxu0
      %331 = vmatprep.mubr.bf16.mxu0 0
      %332 = vmatmul.mubr.bf16.gmra.mrb[0].mxu0 %v273
      %v333 = vpop.f32.mrb[0].mxu0
      %v334 = vadd.f32 0.0, %v333
      %v335 = vpop.f32.mrb[0].mxu0
      %v336 = vpop.f32.mrb[0].mxu0
      %v337 = vadd.f32 0.0, %v336
      %v338 = vpop.f32.mrb[0].mxu0
      %339 = vdwg.mxu0
      %v340 = vld [vmem:[%s2] sm:$0x1]
      %v342 = vlaneseq
      %v343 = vshrl.u32 %v342, 7
      %v344 = vsub.s32 0, %v343
      %v345 = vrot.slane %v340, %v344
      %v347 = vmul.f32 %v310, %v345
      %v348 = vmul.f32 %v313, %v345
      %v349 = vmul.f32 %v318, %v345
      %v350 = vmul.f32 %v321, %v345
      %v351 = vmul.f32 %v326, %v345
      %v352 = vmul.f32 %v329, %v345
      %v353 = vmul.f32 %v334, %v345
      %v354 = vmul.f32 %v337, %v345
      %v355 = vld [vmem:[%s3] sm:$0x1]
      %v357 = vlaneseq
      %v358 = vshrl.u32 %v357, 7
      %v359 = vsub.s32 0, %v358
      %v360 = vrot.slane %v355, %v359
      %v362 = vadd.f32 %v347, %v360
      %v363 = vadd.f32 %v348, %v360
      %v364 = vadd.f32 %v349, %v360
      %v365 = vadd.f32 %v350, %v360
      %v366 = vadd.f32 %v351, %v360
      %v367 = vadd.f32 %v352, %v360
      %v368 = vadd.f32 %v353, %v360
      %v369 = vadd.f32 %v354, %v360
      %vm370 = vcmask 261120
      %371 = vst.msk [vmem:[%s199] sm:$0xff] %vm370, %v362
      %372 = vst.msk [vmem:[%s199 + $0x8] sm:$0xff] %vm370, %v363
      %373 = vst.msk [vmem:[%s199 + $0x10] sm:$0xff] %vm370, %v364
      %374 = vst.msk [vmem:[%s199 + $0x18] sm:$0xff] %vm370, %v365
      %375 = vst.msk [vmem:[%s199 + $0x20] sm:$0xff] %vm370, %v366
      %376 = vst.msk [vmem:[%s199 + $0x28] sm:$0xff] %vm370, %v367
      %377 = vst.msk [vmem:[%s199 + $0x30] sm:$0xff] %vm370, %v368
      %378 = vst.msk [vmem:[%s199 + $0x38] sm:$0xff] %vm370, %v369
      %s379 = smul.u32 8, %s15
      %p380 = scmp.lt.s32.totalorder %s379, 15
      %s381 = scalar_select %p380, %s379, 15
      %s382 = smul.addr %s381, 8
      %s383 = scalar_lea.vmem %s4, %s382
      // Predicated region
      $region37: #{hourglass_forward.11} parent=35 // pred_check
        %p384 = pneg %p122
      $region38: #{hourglass_forward.11} parent=35 // pred_check_branch
        %386 = sbr.rel (%p384) target = $region40
      $region39: #{hourglass_forward.11} parent=35 // pred_region
        %s387 = smul.u32 8, %s15
      $region40: #{hourglass_forward.11} parent=35 // pred_fallthru
        _
    $region36: #{hourglass_forward.11} parent=5 // pred_fallthru
      _
    %p388 = scmp.le.s32.totalorder 2, %s10
    // Predicated region
    $region41: #{hourglass_forward.11} parent=5 // pred_check
      %p389 = pneg %p388
    $region42: #{hourglass_forward.11} parent=5 // pred_check_branch
      %391 = sbr.rel (%p389) target = $region44
    $region43: #{hourglass_forward.11} parent=5 // pred_region
      %s392 = ssub.s32 %s10, 2
      // Predicated region
      $region45: #{hourglass_forward.11} parent=43 // pred_check
        %p393 = pneg %p128
      $region46: #{hourglass_forward.11} parent=43 // pred_check_branch
        %395 = sbr.rel (%p393) target = $region48
      $region47: #{hourglass_forward.11} parent=43 // pred_region
        %s396 = smul.u32 8, %s16
        %p397 = scmp.lt.s32.totalorder %s396, 15
        %s398 = scalar_select %p397, %s396, 15
        %s399 = smul.addr %s398, 8
        %s400 = scalar_lea.vmem %s4, %s399
      $region48: #{hourglass_forward.11} parent=43 // pred_fallthru
        _
    $region44: #{hourglass_forward.11} parent=5 // pred_fallthru
      _
  $region6: #{hourglass_forward.11} parent=0 // loop_footer
    %s14 = sadd.s32 1, %s10
  $region7: #{hourglass_forward.11} parent=0 // loop_footer_branch
    %9 = sbr.rel target = $region3
  $region8: #{hourglass_forward.11} parent=0 // loop_exit
    _

</llo_original>
